<compile_context>
chip_gen: v6e
topology: v6e:2x2x1
jax: 0.10.0
libtpu: 0.0.40
codegen_flags: <defaults>
</compile_context>

<pallas_src>
import jax
import jax.numpy as jnp
from jax import lax
from jax.experimental import pallas as pl
from jax.experimental.pallas import tpu as pltpu


def _round_up(x, m):
    return (x + m - 1) // m * m


# ---------------------------------------------------------------------------
# Pallas kernel:  o = relu( sum_t  x[rows + off_t] @ w[t]  + bias ) (+ residual)
#
# The conv is expressed over flattened spatial rows of the padded activation:
# output row q (= i * W_pad + j) of tap t reads input row q + off_t, so every
# tap is a contiguous (tm x Cin) slice at a static offset from the chunk base.
# ---------------------------------------------------------------------------
def _make_tap_conv_kernel(tap_offsets, tm, has_residual):
    def kernel(*refs):
        if has_residual:
            x_ref, w_ref, b_ref, r_ref, o_ref = refs
        else:
            x_ref, w_ref, b_ref, o_ref = refs
            r_ref = None
        # x_ref: (R, Cin) full per-image slab (resident across row chunks)
        # w_ref: (T, Cin, Co) stacked tap weights (resident), bf16
        # b_ref: (1, Co) f32, o_ref/r_ref: (tm, Co)
        base = pl.multiple_of(pl.program_id(1) * tm, tm)
        co = o_ref.shape[-1]
        acc = jnp.zeros((tm, co), jnp.float32)
        for t, off in enumerate(tap_offsets):           # static unroll (4 or 9)
            a = x_ref[pl.ds(base + off, tm), :].astype(jnp.bfloat16)
            acc = acc + jnp.dot(a, w_ref[t], preferred_element_type=jnp.float32)
        y = jnp.maximum(acc + b_ref[...], 0.0)          # bias + ReLU in f32
        if has_residual:
            y = y + r_ref[...]                          # residual added after ReLU
        o_ref[...] = y.astype(o_ref.dtype)
    return kernel


def tap_conv(x_flat, w_taps, bias, tap_offsets, m_valid, *, residual=None,
             tm_target=512):
    """Conv as a sum over taps of row-shifted matmuls.

    x_flat:   (N, R, Cin) f32   flattened, spatially padded activation rows
    w_taps:   (T, Cin, Co) bf16 stacked per-tap weights
    bias:     (1, Co) f32
    tap_offsets: static row offset per tap
    m_valid:  valid ("over-complete" flattened) output rows per image
    residual: optional (N, m_valid, Co) f32, added after ReLU
    returns:  (N, m_valid, Co) f32
    """
    N, R, cin = x_flat.shape
    T, _, co = w_taps.shape
    max_off = max(tap_offsets)

    tm = min(tm_target, _round_up(m_valid, 8))
    m_pad = _round_up(m_valid, tm)          # no divisibility assert: pad instead
    n_chunks = m_pad // tm

    r_need = m_pad + max_off                # rows read by the last (padded) chunk
    if R < r_need:
        x_flat = jnp.pad(x_flat, ((0, 0), (0, r_need - R), (0, 0)))
        R = r_need

    has_res = residual is not None
    operands = [x_flat, w_taps, bias]
    in_specs = [
        # full per-image slab, resident across the row-chunk grid axis
        pl.BlockSpec((None, R, cin), lambda n, c: (n, 0, 0)),
        # resident weights / bias (constant index_map).  (pipeline_mode=
        # pl.Buffered(1) would drop their double buffer; skipped for safety.)
        pl.BlockSpec((T, cin, co), lambda n, c: (0, 0, 0)),
        pl.BlockSpec((1, co), lambda n, c: (0, 0)),
    ]
    if has_res:
        res = residual.astype(jnp.float32)
        if res.shape[1] < m_pad:
            res = jnp.pad(res, ((0, 0), (0, m_pad - res.shape[1]), (0, 0)))
        operands.append(res)
        in_specs.append(pl.BlockSpec((None, tm, co), lambda n, c: (n, c, 0)))

    out = pl.pallas_call(
        _make_tap_conv_kernel(tuple(tap_offsets), tm, has_res),
        out_shape=jax.ShapeDtypeStruct((N, m_pad, co), jnp.float32),
        grid_spec=pltpu.PrefetchScalarGridSpec(
            num_scalar_prefetch=0,
            grid=(N, n_chunks),
            in_specs=in_specs,
            out_specs=pl.BlockSpec((None, tm, co), lambda n, c: (n, c, 0)),
        ),
        compiler_params=pltpu.CompilerParams(
            dimension_semantics=("parallel", "parallel"),
            vmem_limit_bytes=64 * 1024 * 1024),
    )(*operands)
    return out[:, :m_valid, :]


# ---------------------------------------------------------------------------
# Conv wrappers (pure-JAX glue: pad / reshape only, no im2col blowup)
# ---------------------------------------------------------------------------
def conv3x3_s2_fused_bn_relu(x, w, bias_eff):
    """3x3 / stride-2 / pad-1 conv + per-channel bias + ReLU.

    Space-to-depth turns it into a stride-1 2x2 conv with 4*Cin channels, which
    the tap-conv kernel handles with 4 taps.
    x: (N, H, W, Cin) f32, w: (3,3,Cin,Cout) (BN scale already folded in),
    bias_eff: (Cout,).  Returns (N, ceil(H/2), ceil(W/2), Cout) f32.
    """
    N, H, W, cin = x.shape
    cout = w.shape[-1]
    he, we = H + (H % 2), W + (W % 2)                    # odd sizes: extra zero pad
    ho, wo = he // 2, we // 2
    xp = jnp.pad(x, ((0, 0), (1, 1 + he - H), (1, 1 + we - W), (0, 0)))
    hp2, wp2 = (he + 2) // 2, (we + 2) // 2
    # space-to-depth: y[n,a,b, sh*2C + sw*C + c] = x_pad[n, 2a+sh, 2b+sw, c]
    y = jnp.transpose(xp.reshape(N, hp2, 2, wp2, 2, cin), (0, 1, 3, 2, 4, 5))
    y_flat = y.reshape(N, hp2 * wp2, 4 * cin)
    # tap (dh,dw) weight = 2x2 block of the zero-padded 4x4 kernel
    wpad = jnp.pad(w, ((0, 1), (0, 1), (0, 0), (0, 0)))  # (4,4,Cin,Cout)
    taps = [wpad[2 * dh:2 * dh + 2, 2 * dw:2 * dw + 2].reshape(4 * cin, cout)
            for dh in range(2) for dw in range(2)]
    w_taps = jnp.stack(taps, 0).astype(jnp.bfloat16)      # (4, 4Cin, Cout)
    tap_off = [dh * wp2 + dw for dh in range(2) for dw in range(2)]
    out = tap_conv(y_flat, w_taps,
                   bias_eff.reshape(1, cout).astype(jnp.float32),
                   tap_off, ho * wp2)
    return out.reshape(N, ho, wp2, cout)[:, :, :wo, :]


def conv3x3_s1_pair_fused(p, w_a, b_a, w_b, b_b, res_a=None, res_b=None):
    """Two 3x3 / stride-1 / pad-1 convs on the same input, fused along Cout.

    out_* = relu(conv(p, w_*) + b_*) [+ res_*];  p: (N, Ho, Wo, C) f32.
    """
    N, ho, wo, c = p.shape
    co = w_a.shape[-1]
    wp = wo + 2
    p_pad = jnp.pad(p, ((0, 0), (1, 1), (1, 1), (0, 0)))          # (N, ho+2, wp, c)
    p_flat = p_pad.reshape(N, (ho + 2) * wp, c)
    w_cat = jnp.concatenate([w_a, w_b], axis=-1)                   # (3,3,c,2co)
    w_taps = jnp.stack([w_cat[kh, kw] for kh in range(3) for kw in range(3)],
                       0).astype(jnp.bfloat16)                     # (9, c, 2co)
    bias = jnp.concatenate([b_a, b_b]).reshape(1, 2 * co).astype(jnp.float32)
    tap_off = [kh * wp + kw for kh in range(3) for kw in range(3)]
    m_valid = ho * wp                                              # over-complete rows

    residual = None
    if res_a is not None:
        r = jnp.concatenate([res_a, res_b], axis=-1)               # (N,ho,wo,2co)
        r = jnp.pad(r, ((0, 0), (0, 0), (0, wp - wo), (0, 0)))
        residual = r.reshape(N, m_valid, 2 * co)

    out = tap_conv(p_flat, w_taps, bias, tap_off, m_valid, residual=residual)
    out = out.reshape(N, ho, wp, 2 * co)[:, :, :wo, :]
    return out[..., :co], out[..., co:]


# ---------------------------------------------------------------------------
# Module: ConvBottomBranch
# ---------------------------------------------------------------------------
class ConvBottomBranchPallas:
    def __init__(self, in_channels, out_channels, key):
        ks = jax.random.split(key, 8)

        def kaiming(k, cin, cout):
            # nn.init.kaiming_normal_(w, a=1): std = sqrt(2 / ((1+1^2)*fan_in))
            fan_in = cin * 9
            std = (1.0 / fan_in) ** 0.5
            return std * jax.random.normal(k, (3, 3, cin, cout), jnp.float32)

        # conv (stride 2) + FrozenBatchNorm2d buffers
        self.w_conv = kaiming(ks[0], in_channels, out_channels)
        self.b_conv = jnp.zeros((out_channels,), jnp.float32)
        self.bn_weight = 1.0 + 0.1 * jax.random.normal(ks[1], (out_channels,))
        self.bn_bias = 0.1 * jax.random.normal(ks[2], (out_channels,))
        self.bn_mean = 0.05 * jax.random.normal(ks[3], (out_channels,))
        self.bn_var = jnp.abs(1.0 + 0.1 * jax.random.normal(ks[4], (out_channels,)))
        # agg / appr convs (stride 1)
        self.w_agg = kaiming(ks[5], out_channels, out_channels)
        self.b_agg = jnp.zeros((out_channels,), jnp.float32)
        self.w_appr = kaiming(ks[6], out_channels, out_channels)
        self.b_appr = jnp.zeros((out_channels,), jnp.float32)

    def _bn_affine(self):
        scale = self.bn_weight * lax.rsqrt(self.bn_var)
        shift = self.bn_bias - self.bn_mean * scale
        return scale, shift

    def __call__(self, x, de=None):
        scale, shift = self._bn_affine()
        # fold FrozenBatchNorm into the conv: (conv + b)*s + t = conv(w*s) + (b*s + t)
        w1 = self.w_conv * scale
        b1 = self.b_conv * scale + shift
        p = conv3x3_s2_fused_bn_relu(x, w1, b1)
        agg, appr = conv3x3_s1_pair_fused(
            p, self.w_agg, self.b_agg, self.w_appr, self.b_appr,
            None if de is None else de["agg"],
            None if de is None else de["appr"])
        return {"agg": agg, "appr": appr}

    # pure-JAX reference (lax.conv) using the same bf16 matmul operands.
    def reference(self, x, de=None):
        def conv(x, w, stride):
            return lax.conv_general_dilated(
                x.astype(jnp.bfloat16), w.astype(jnp.bfloat16),
                (stride, stride), ((1, 1), (1, 1)),
                dimension_numbers=("NHWC", "HWIO", "NHWC"),
                preferred_element_type=jnp.float32)

        scale, shift = self._bn_affine()
        p = jax.nn.relu(conv(x, self.w_conv * scale, 2)
                        + (self.b_conv * scale + shift).reshape(1, 1, 1, -1))
        agg = jax.nn.relu(conv(p, self.w_agg, 1) + self.b_agg.reshape(1, 1, 1, -1))
        appr = jax.nn.relu(conv(p, self.w_appr, 1) + self.b_appr.reshape(1, 1, 1, -1))
        if de is not None:
            agg = agg + de["agg"]
            appr = appr + de["appr"]
        return {"agg": agg, "appr": appr}


if __name__ == "__main__":
    key = jax.random.PRNGKey(0)
    k_param, k_x, k_de1, k_de2 = jax.random.split(key, 4)

    N, H, W, Cin, Cout = 2, 16, 16, 4, 8
    x = jax.random.normal(k_x, (N, H, W, Cin), jnp.float32)   # NHWC
    # `de` residuals have the shape of the stride-2 conv outputs: (N, 8, 8, Cout)
    de = {
        "agg": jax.random.normal(k_de1, (N, H // 2, W // 2, Cout), jnp.float32),
        "appr": jax.random.normal(k_de2, (N, H // 2, W // 2, Cout), jnp.float32),
    }

    mod = ConvBottomBranchPallas(Cin, Cout, k_param)
    out = jax.jit(lambda x, de: mod(x, de))(x, de)
    jax.block_until_ready(out)

    ref = mod.reference(x, de)
    for name in ("agg", "appr"):
        assert out[name].shape == (N, H // 2, W // 2, Cout), out[name].shape
        assert jnp.allclose(out[name], ref[name], atol=1e-2, rtol=1e-2), (
            name, float(jnp.max(jnp.abs(out[name] - ref[name]))))

    # also exercise the de=None path (kernel variant with no residual stream)
    out2 = mod(x, None)
    jax.block_until_ready(out2)
    ref2 = mod.reference(x, None)
    for name in ("agg", "appr"):
        assert jnp.allclose(out2[name], ref2[name], atol=1e-2, rtol=1e-2), name

    print("KERNEL_OK")
</pallas_src>

<mosaic_0001>
module attributes {stable_mosaic.version = 11 : i64} {
  func.func @kernel(%arg0: i32, %arg1: i32, %arg2: memref<1x82x16xf32, #tpu.memory_space<vmem>>, %arg3: memref<4x16x8xbf16, #tpu.memory_space<vmem>>, %arg4: memref<1x8xf32, #tpu.memory_space<vmem>>, %arg5: memref<1x72x8xf32, #tpu.memory_space<vmem>>) attributes {dimension_semantics = [#tpu.dimension_semantics<parallel>, #tpu.dimension_semantics<parallel>], iteration_bounds = array<i64: 2, 1>, scalar_prefetch = 0 : i64, scratch_operands = 0 : i64, tpu.core_type = #tpu.core_type<tc>, window_params = [{transform_indices = @transform_0, window_bounds = array<i64: 1, 82, 16>}, {pipeline_mode = #tpu.pipeline_mode<synchronous>, transform_indices = @transform_1, window_bounds = array<i64: 4, 16, 8>}, {pipeline_mode = #tpu.pipeline_mode<synchronous>, transform_indices = @transform_2, window_bounds = array<i64: 1, 8>}, {transform_indices = @transform_3, window_bounds = array<i64: 1, 72, 8>}]} {
    %c72_i32 = arith.constant 72 : i32
    %0 = arith.muli %arg1, %c72_i32 : i32
    %1 = tpu.assume_multiple %0, 72 : i32
    %cst = arith.constant 0.000000e+00 : f32
    %2 = vector.broadcast %cst : f32 to vector<72x8xf32>
    %c0_i32 = arith.constant 0 : i32
    %3 = arith.addi %1, %c0_i32 : i32
    %c0 = arith.constant 0 : index
    %4 = arith.index_cast %3 : i32 to index
    %c0_0 = arith.constant 0 : index
    %5 = vector.load %arg2[%c0, %4, %c0_0] : memref<1x82x16xf32, #tpu.memory_space<vmem>>, vector<1x72x16xf32>
    %6 = vector.shape_cast %5 : vector<1x72x16xf32> to vector<72x16xf32>
    %7 = arith.truncf %6 : vector<72x16xf32> to vector<72x16xbf16>
    %c0_1 = arith.constant 0 : index
    %c0_2 = arith.constant 0 : index
    %c0_3 = arith.constant 0 : index
    %8 = vector.load %arg3[%c0_1, %c0_2, %c0_3] : memref<4x16x8xbf16, #tpu.memory_space<vmem>>, vector<1x16x8xbf16>
    %9 = vector.shape_cast %8 : vector<1x16x8xbf16> to vector<16x8xbf16>
    %cst_4 = arith.constant dense<0.000000e+00> : vector<72x8xf32>
    %10 = tpu.matmul %7, %9, %cst_4 {dimension_numbers = #tpu.dot_dimension_numbers<[1], [0], [0], [1], [0, 0, 1, 1], [], []>} : vector<72x16xbf16>, vector<16x8xbf16>, vector<72x8xf32> -> vector<72x8xf32>
    %11 = arith.addf %2, %10 : vector<72x8xf32>
    %c1_i32 = arith.constant 1 : i32
    %12 = arith.addi %1, %c1_i32 : i32
    %c0_5 = arith.constant 0 : index
    %13 = arith.index_cast %12 : i32 to index
    %c0_6 = arith.constant 0 : index
    %14 = vector.load %arg2[%c0_5, %13, %c0_6] : memref<1x82x16xf32, #tpu.memory_space<vmem>>, vector<1x72x16xf32>
    %15 = vector.shape_cast %14 : vector<1x72x16xf32> to vector<72x16xf32>
    %16 = arith.truncf %15 : vector<72x16xf32> to vector<72x16xbf16>
    %c1 = arith.constant 1 : index
    %c0_7 = arith.constant 0 : index
    %c0_8 = arith.constant 0 : index
    %17 = vector.load %arg3[%c1, %c0_7, %c0_8] : memref<4x16x8xbf16, #tpu.memory_space<vmem>>, vector<1x16x8xbf16>
    %18 = vector.shape_cast %17 : vector<1x16x8xbf16> to vector<16x8xbf16>
    %cst_9 = arith.constant dense<0.000000e+00> : vector<72x8xf32>
    %19 = tpu.matmul %16, %18, %cst_9 {dimension_numbers = #tpu.dot_dimension_numbers<[1], [0], [0], [1], [0, 0, 1, 1], [], []>} : vector<72x16xbf16>, vector<16x8xbf16>, vector<72x8xf32> -> vector<72x8xf32>
    %20 = arith.addf %11, %19 : vector<72x8xf32>
    %c9_i32 = arith.constant 9 : i32
    %21 = arith.addi %1, %c9_i32 : i32
    %c0_10 = arith.constant 0 : index
    %22 = arith.index_cast %21 : i32 to index
    %c0_11 = arith.constant 0 : index
    %23 = vector.load %arg2[%c0_10, %22, %c0_11] : memref<1x82x16xf32, #tpu.memory_space<vmem>>, vector<1x72x16xf32>
    %24 = vector.shape_cast %23 : vector<1x72x16xf32> to vector<72x16xf32>
    %25 = arith.truncf %24 : vector<72x16xf32> to vector<72x16xbf16>
    %c2 = arith.constant 2 : index
    %c0_12 = arith.constant 0 : index
    %c0_13 = arith.constant 0 : index
    %26 = vector.load %arg3[%c2, %c0_12, %c0_13] : memref<4x16x8xbf16, #tpu.memory_space<vmem>>, vector<1x16x8xbf16>
    %27 = vector.shape_cast %26 : vector<1x16x8xbf16> to vector<16x8xbf16>
    %cst_14 = arith.constant dense<0.000000e+00> : vector<72x8xf32>
    %28 = tpu.matmul %25, %27, %cst_14 {dimension_numbers = #tpu.dot_dimension_numbers<[1], [0], [0], [1], [0, 0, 1, 1], [], []>} : vector<72x16xbf16>, vector<16x8xbf16>, vector<72x8xf32> -> vector<72x8xf32>
    %29 = arith.addf %20, %28 : vector<72x8xf32>
    %c10_i32 = arith.constant 10 : i32
    %30 = arith.addi %1, %c10_i32 : i32
    %c0_15 = arith.constant 0 : index
    %31 = arith.index_cast %30 : i32 to index
    %c0_16 = arith.constant 0 : index
    %32 = vector.load %arg2[%c0_15, %31, %c0_16] : memref<1x82x16xf32, #tpu.memory_space<vmem>>, vector<1x72x16xf32>
    %33 = vector.shape_cast %32 : vector<1x72x16xf32> to vector<72x16xf32>
    %34 = arith.truncf %33 : vector<72x16xf32> to vector<72x16xbf16>
    %c3 = arith.constant 3 : index
    %c0_17 = arith.constant 0 : index
    %c0_18 = arith.constant 0 : index
    %35 = vector.load %arg3[%c3, %c0_17, %c0_18] : memref<4x16x8xbf16, #tpu.memory_space<vmem>>, vector<1x16x8xbf16>
    %36 = vector.shape_cast %35 : vector<1x16x8xbf16> to vector<16x8xbf16>
    %cst_19 = arith.constant dense<0.000000e+00> : vector<72x8xf32>
    %37 = tpu.matmul %34, %36, %cst_19 {dimension_numbers = #tpu.dot_dimension_numbers<[1], [0], [0], [1], [0, 0, 1, 1], [], []>} : vector<72x16xbf16>, vector<16x8xbf16>, vector<72x8xf32> -> vector<72x8xf32>
    %38 = arith.addf %29, %37 : vector<72x8xf32>
    %c0_20 = arith.constant 0 : index
    %c0_21 = arith.constant 0 : index
    %39 = vector.load %arg4[%c0_20, %c0_21] : memref<1x8xf32, #tpu.memory_space<vmem>>, vector<1x8xf32>
    %40 = vector.broadcast %39 : vector<1x8xf32> to vector<72x8xf32>
    %41 = arith.addf %38, %40 : vector<72x8xf32>
    %cst_22 = arith.constant 0.000000e+00 : f32
    %42 = vector.broadcast %cst_22 : f32 to vector<72x8xf32>
    %43 = arith.maximumf %41, %42 : vector<72x8xf32>
    %c0_23 = arith.constant 0 : index
    %c0_24 = arith.constant 0 : index
    %c0_25 = arith.constant 0 : index
    %44 = vector.load %arg5[%c0_23, %c0_24, %c0_25] : memref<1x72x8xf32, #tpu.memory_space<vmem>>, vector<1x72x8xf32>
    %45 = vector.shape_cast %44 : vector<1x72x8xf32> to vector<72x8xf32>
    %46 = vector.shape_cast %43 : vector<72x8xf32> to vector<1x72x8xf32>
    tpu.vector_store %arg5[%c0_23, %c0_24, %c0_25], %46 {strides = array<i32>} : memref<1x72x8xf32, #tpu.memory_space<vmem>>, vector<1x72x8xf32>,
    return
  }
  func.func @transform_0(%arg0: i32, %arg1: i32) -> (i32, i32, i32) {
    %c0_i32 = arith.constant 0 : i32
    %c0_i32_0 = arith.constant 0 : i32
    %c0_i32_1 = arith.constant 0 : i32
    return %arg0, %c0_i32, %c0_i32_0 : i32, i32, i32
  }
  func.func @transform_1(%arg0: i32, %arg1: i32) -> (i32, i32, i32) {
    %c0_i32 = arith.constant 0 : i32
    %c0_i32_0 = arith.constant 0 : i32
    %c0_i32_1 = arith.constant 0 : i32
    %c0_i32_2 = arith.constant 0 : i32
    return %c0_i32, %c0_i32_0, %c0_i32_1 : i32, i32, i32
  }
  func.func @transform_2(%arg0: i32, %arg1: i32) -> (i32, i32) {
    %c0_i32 = arith.constant 0 : i32
    %c0_i32_0 = arith.constant 0 : i32
    %c0_i32_1 = arith.constant 0 : i32
    return %c0_i32, %c0_i32_0 : i32, i32
  }
  func.func @transform_3(%arg0: i32, %arg1: i32) -> (i32, i32, i32) {
    %c0_i32 = arith.constant 0 : i32
    %c0_i32_0 = arith.constant 0 : i32
    return %arg0, %arg1, %c0_i32 : i32, i32, i32
  }
}

module attributes {stable_mosaic.version = 11 : i64} {
  func.func @kernel(%arg0: i32, %arg1: i32, %arg2: memref<1x102x8xf32, #tpu.memory_space<vmem>>, %arg3: memref<9x8x16xbf16, #tpu.memory_space<vmem>>, %arg4: memref<1x16xf32, #tpu.memory_space<vmem>>, %arg5: memref<1x80x16xf32, #tpu.memory_space<vmem>>, %arg6: memref<1x80x16xf32, #tpu.memory_space<vmem>>) attributes {dimension_semantics = [#tpu.dimension_semantics<parallel>, #tpu.dimension_semantics<parallel>], iteration_bounds = array<i64: 2, 1>, scalar_prefetch = 0 : i64, scratch_operands = 0 : i64, tpu.core_type = #tpu.core_type<tc>, window_params = [{transform_indices = @transform_0, window_bounds = array<i64: 1, 102, 8>}, {pipeline_mode = #tpu.pipeline_mode<synchronous>, transform_indices = @transform_1, window_bounds = array<i64: 9, 8, 16>}, {pipeline_mode = #tpu.pipeline_mode<synchronous>, transform_indices = @transform_2, window_bounds = array<i64: 1, 16>}, {transform_indices = @transform_3, window_bounds = array<i64: 1, 80, 16>}, {transform_indices = @transform_4, window_bounds = array<i64: 1, 80, 16>}]} {
    %c80_i32 = arith.constant 80 : i32
    %0 = arith.muli %arg1, %c80_i32 : i32
    %1 = tpu.assume_multiple %0, 80 : i32
    %cst = arith.constant 0.000000e+00 : f32
    %2 = vector.broadcast %cst : f32 to vector<80x16xf32>
    %c0_i32 = arith.constant 0 : i32
    %3 = arith.addi %1, %c0_i32 : i32
    %c0 = arith.constant 0 : index
    %4 = arith.index_cast %3 : i32 to index
    %c0_0 = arith.constant 0 : index
    %5 = vector.load %arg2[%c0, %4, %c0_0] : memref<1x102x8xf32, #tpu.memory_space<vmem>>, vector<1x80x8xf32>
    %6 = vector.shape_cast %5 : vector<1x80x8xf32> to vector<80x8xf32>
    %7 = arith.truncf %6 : vector<80x8xf32> to vector<80x8xbf16>
    %c0_1 = arith.constant 0 : index
    %c0_2 = arith.constant 0 : index
    %c0_3 = arith.constant 0 : index
    %8 = vector.load %arg3[%c0_1, %c0_2, %c0_3] : memref<9x8x16xbf16, #tpu.memory_space<vmem>>, vector<1x8x16xbf16>
    %9 = vector.shape_cast %8 : vector<1x8x16xbf16> to vector<8x16xbf16>
    %cst_4 = arith.constant dense<0.000000e+00> : vector<80x16xf32>
    %10 = tpu.matmul %7, %9, %cst_4 {dimension_numbers = #tpu.dot_dimension_numbers<[1], [0], [0], [1], [0, 0, 1, 1], [], []>} : vector<80x8xbf16>, vector<8x16xbf16>, vector<80x16xf32> -> vector<80x16xf32>
    %11 = arith.addf %2, %10 : vector<80x16xf32>
    %c1_i32 = arith.constant 1 : i32
    %12 = arith.addi %1, %c1_i32 : i32
    %c0_5 = arith.constant 0 : index
    %13 = arith.index_cast %12 : i32 to index
    %c0_6 = arith.constant 0 : index
    %14 = vector.load %arg2[%c0_5, %13, %c0_6] : memref<1x102x8xf32, #tpu.memory_space<vmem>>, vector<1x80x8xf32>
    %15 = vector.shape_cast %14 : vector<1x80x8xf32> to vector<80x8xf32>
    %16 = arith.truncf %15 : vector<80x8xf32> to vector<80x8xbf16>
    %c1 = arith.constant 1 : index
    %c0_7 = arith.constant 0 : index
    %c0_8 = arith.constant 0 : index
    %17 = vector.load %arg3[%c1, %c0_7, %c0_8] : memref<9x8x16xbf16, #tpu.memory_space<vmem>>, vector<1x8x16xbf16>
    %18 = vector.shape_cast %17 : vector<1x8x16xbf16> to vector<8x16xbf16>
    %cst_9 = arith.constant dense<0.000000e+00> : vector<80x16xf32>
    %19 = tpu.matmul %16, %18, %cst_9 {dimension_numbers = #tpu.dot_dimension_numbers<[1], [0], [0], [1], [0, 0, 1, 1], [], []>} : vector<80x8xbf16>, vector<8x16xbf16>, vector<80x16xf32> -> vector<80x16xf32>
    %20 = arith.addf %11, %19 : vector<80x16xf32>
    %c2_i32 = arith.constant 2 : i32
    %21 = arith.addi %1, %c2_i32 : i32
    %c0_10 = arith.constant 0 : index
    %22 = arith.index_cast %21 : i32 to index
    %c0_11 = arith.constant 0 : index
    %23 = vector.load %arg2[%c0_10, %22, %c0_11] : memref<1x102x8xf32, #tpu.memory_space<vmem>>, vector<1x80x8xf32>
    %24 = vector.shape_cast %23 : vector<1x80x8xf32> to vector<80x8xf32>
    %25 = arith.truncf %24 : vector<80x8xf32> to vector<80x8xbf16>
    %c2 = arith.constant 2 : index
    %c0_12 = arith.constant 0 : index
    %c0_13 = arith.constant 0 : index
    %26 = vector.load %arg3[%c2, %c0_12, %c0_13] : memref<9x8x16xbf16, #tpu.memory_space<vmem>>, vector<1x8x16xbf16>
    %27 = vector.shape_cast %26 : vector<1x8x16xbf16> to vector<8x16xbf16>
    %cst_14 = arith.constant dense<0.000000e+00> : vector<80x16xf32>
    %28 = tpu.matmul %25, %27, %cst_14 {dimension_numbers = #tpu.dot_dimension_numbers<[1], [0], [0], [1], [0, 0, 1, 1], [], []>} : vector<80x8xbf16>, vector<8x16xbf16>, vector<80x16xf32> -> vector<80x16xf32>
    %29 = arith.addf %20, %28 : vector<80x16xf32>
    %c10_i32 = arith.constant 10 : i32
    %30 = arith.addi %1, %c10_i32 : i32
    %c0_15 = arith.constant 0 : index
    %31 = arith.index_cast %30 : i32 to index
    %c0_16 = arith.constant 0 : index
    %32 = vector.load %arg2[%c0_15, %31, %c0_16] : memref<1x102x8xf32, #tpu.memory_space<vmem>>, vector<1x80x8xf32>
    %33 = vector.shape_cast %32 : vector<1x80x8xf32> to vector<80x8xf32>
    %34 = arith.truncf %33 : vector<80x8xf32> to vector<80x8xbf16>
    %c3 = arith.constant 3 : index
    %c0_17 = arith.constant 0 : index
    %c0_18 = arith.constant 0 : index
    %35 = vector.load %arg3[%c3, %c0_17, %c0_18] : memref<9x8x16xbf16, #tpu.memory_space<vmem>>, vector<1x8x16xbf16>
    %36 = vector.shape_cast %35 : vector<1x8x16xbf16> to vector<8x16xbf16>
    %cst_19 = arith.constant dense<0.000000e+00> : vector<80x16xf32>
    %37 = tpu.matmul %34, %36, %cst_19 {dimension_numbers = #tpu.dot_dimension_numbers<[1], [0], [0], [1], [0, 0, 1, 1], [], []>} : vector<80x8xbf16>, vector<8x16xbf16>, vector<80x16xf32> -> vector<80x16xf32>
    %38 = arith.addf %29, %37 : vector<80x16xf32>
    %c11_i32 = arith.constant 11 : i32
    %39 = arith.addi %1, %c11_i32 : i32
    %c0_20 = arith.constant 0 : index
    %40 = arith.index_cast %39 : i32 to index
    %c0_21 = arith.constant 0 : index
    %41 = vector.load %arg2[%c0_20, %40, %c0_21] : memref<1x102x8xf32, #tpu.memory_space<vmem>>, vector<1x80x8xf32>
    %42 = vector.shape_cast %41 : vector<1x80x8xf32> to vector<80x8xf32>
    %43 = arith.truncf %42 : vector<80x8xf32> to vector<80x8xbf16>
    %c4 = arith.constant 4 : index
    %c0_22 = arith.constant 0 : index
    %c0_23 = arith.constant 0 : index
    %44 = vector.load %arg3[%c4, %c0_22, %c0_23] : memref<9x8x16xbf16, #tpu.memory_space<vmem>>, vector<1x8x16xbf16>
    %45 = vector.shape_cast %44 : vector<1x8x16xbf16> to vector<8x16xbf16>
    %cst_24 = arith.constant dense<0.000000e+00> : vector<80x16xf32>
    %46 = tpu.matmul %43, %45, %cst_24 {dimension_numbers = #tpu.dot_dimension_numbers<[1], [0], [0], [1], [0, 0, 1, 1], [], []>} : vector<80x8xbf16>, vector<8x16xbf16>, vector<80x16xf32> -> vector<80x16xf32>
    %47 = arith.addf %38, %46 : vector<80x16xf32>
    %c12_i32 = arith.constant 12 : i32
    %48 = arith.addi %1, %c12_i32 : i32
    %c0_25 = arith.constant 0 : index
    %49 = arith.index_cast %48 : i32 to index
    %c0_26 = arith.constant 0 : index
    %50 = vector.load %arg2[%c0_25, %49, %c0_26] : memref<1x102x8xf32, #tpu.memory_space<vmem>>, vector<1x80x8xf32>
    %51 = vector.shape_cast %50 : vector<1x80x8xf32> to vector<80x8xf32>
    %52 = arith.truncf %51 : vector<80x8xf32> to vector<80x8xbf16>
    %c5 = arith.constant 5 : index
    %c0_27 = arith.constant 0 : index
    %c0_28 = arith.constant 0 : index
    %53 = vector.load %arg3[%c5, %c0_27, %c0_28] : memref<9x8x16xbf16, #tpu.memory_space<vmem>>, vector<1x8x16xbf16>
    %54 = vector.shape_cast %53 : vector<1x8x16xbf16> to vector<8x16xbf16>
    %cst_29 = arith.constant dense<0.000000e+00> : vector<80x16xf32>
    %55 = tpu.matmul %52, %54, %cst_29 {dimension_numbers = #tpu.dot_dimension_numbers<[1], [0], [0], [1], [0, 0, 1, 1], [], []>} : vector<80x8xbf16>, vector<8x16xbf16>, vector<80x16xf32> -> vector<80x16xf32>
    %56 = arith.addf %47, %55 : vector<80x16xf32>
    %c20_i32 = arith.constant 20 : i32
    %57 = arith.addi %1, %c20_i32 : i32
    %c0_30 = arith.constant 0 : index
    %58 = arith.index_cast %57 : i32 to index
    %c0_31 = arith.constant 0 : index
    %59 = vector.load %arg2[%c0_30, %58, %c0_31] : memref<1x102x8xf32, #tpu.memory_space<vmem>>, vector<1x80x8xf32>
    %60 = vector.shape_cast %59 : vector<1x80x8xf32> to vector<80x8xf32>
    %61 = arith.truncf %60 : vector<80x8xf32> to vector<80x8xbf16>
    %c6 = arith.constant 6 : index
    %c0_32 = arith.constant 0 : index
    %c0_33 = arith.constant 0 : index
    %62 = vector.load %arg3[%c6, %c0_32, %c0_33] : memref<9x8x16xbf16, #tpu.memory_space<vmem>>, vector<1x8x16xbf16>
    %63 = vector.shape_cast %62 : vector<1x8x16xbf16> to vector<8x16xbf16>
    %cst_34 = arith.constant dense<0.000000e+00> : vector<80x16xf32>
    %64 = tpu.matmul %61, %63, %cst_34 {dimension_numbers = #tpu.dot_dimension_numbers<[1], [0], [0], [1], [0, 0, 1, 1], [], []>} : vector<80x8xbf16>, vector<8x16xbf16>, vector<80x16xf32> -> vector<80x16xf32>
    %65 = arith.addf %56, %64 : vector<80x16xf32>
    %c21_i32 = arith.constant 21 : i32
    %66 = arith.addi %1, %c21_i32 : i32
    %c0_35 = arith.constant 0 : index
    %67 = arith.index_cast %66 : i32 to index
    %c0_36 = arith.constant 0 : index
    %68 = vector.load %arg2[%c0_35, %67, %c0_36] : memref<1x102x8xf32, #tpu.memory_space<vmem>>, vector<1x80x8xf32>
    %69 = vector.shape_cast %68 : vector<1x80x8xf32> to vector<80x8xf32>
    %70 = arith.truncf %69 : vector<80x8xf32> to vector<80x8xbf16>
    %c7 = arith.constant 7 : index
    %c0_37 = arith.constant 0 : index
    %c0_38 = arith.constant 0 : index
    %71 = vector.load %arg3[%c7, %c0_37, %c0_38] : memref<9x8x16xbf16, #tpu.memory_space<vmem>>, vector<1x8x16xbf16>
    %72 = vector.shape_cast %71 : vector<1x8x16xbf16> to vector<8x16xbf16>
    %cst_39 = arith.constant dense<0.000000e+00> : vector<80x16xf32>
    %73 = tpu.matmul %70, %72, %cst_39 {dimension_numbers = #tpu.dot_dimension_numbers<[1], [0], [0], [1], [0, 0, 1, 1], [], []>} : vector<80x8xbf16>, vector<8x16xbf16>, vector<80x16xf32> -> vector<80x16xf32>
    %74 = arith.addf %65, %73 : vector<80x16xf32>
    %c22_i32 = arith.constant 22 : i32
    %75 = arith.addi %1, %c22_i32 : i32
    %c0_40 = arith.constant 0 : index
    %76 = arith.index_cast %75 : i32 to index
    %c0_41 = arith.constant 0 : index
    %77 = vector.load %arg2[%c0_40, %76, %c0_41] : memref<1x102x8xf32, #tpu.memory_space<vmem>>, vector<1x80x8xf32>
    %78 = vector.shape_cast %77 : vector<1x80x8xf32> to vector<80x8xf32>
    %79 = arith.truncf %78 : vector<80x8xf32> to vector<80x8xbf16>
    %c8 = arith.constant 8 : index
    %c0_42 = arith.constant 0 : index
    %c0_43 = arith.constant 0 : index
    %80 = vector.load %arg3[%c8, %c0_42, %c0_43] : memref<9x8x16xbf16, #tpu.memory_space<vmem>>, vector<1x8x16xbf16>
    %81 = vector.shape_cast %80 : vector<1x8x16xbf16> to vector<8x16xbf16>
    %cst_44 = arith.constant dense<0.000000e+00> : vector<80x16xf32>
    %82 = tpu.matmul %79, %81, %cst_44 {dimension_numbers = #tpu.dot_dimension_numbers<[1], [0], [0], [1], [0, 0, 1, 1], [], []>} : vector<80x8xbf16>, vector<8x16xbf16>, vector<80x16xf32> -> vector<80x16xf32>
    %83 = arith.addf %74, %82 : vector<80x16xf32>
    %c0_45 = arith.constant 0 : index
    %c0_46 = arith.constant 0 : index
    %84 = vector.load %arg4[%c0_45, %c0_46] : memref<1x16xf32, #tpu.memory_space<vmem>>, vector<1x16xf32>
    %85 = vector.broadcast %84 : vector<1x16xf32> to vector<80x16xf32>
    %86 = arith.addf %83, %85 : vector<80x16xf32>
    %cst_47 = arith.constant 0.000000e+00 : f32
    %87 = vector.broadcast %cst_47 : f32 to vector<80x16xf32>
    %88 = arith.maximumf %86, %87 : vector<80x16xf32>
    %c0_48 = arith.constant 0 : index
    %c0_49 = arith.constant 0 : index
    %c0_50 = arith.constant 0 : index
    %89 = vector.load %arg5[%c0_48, %c0_49, %c0_50] : memref<1x80x16xf32, #tpu.memory_space<vmem>>, vector<1x80x16xf32>
    %90 = vector.shape_cast %89 : vector<1x80x16xf32> to vector<80x16xf32>
    %91 = arith.addf %88, %90 : vector<80x16xf32>
    %c0_51 = arith.constant 0 : index
    %c0_52 = arith.constant 0 : index
    %c0_53 = arith.constant 0 : index
    %92 = vector.load %arg6[%c0_51, %c0_52, %c0_53] : memref<1x80x16xf32, #tpu.memory_space<vmem>>, vector<1x80x16xf32>
    %93 = vector.shape_cast %92 : vector<1x80x16xf32> to vector<80x16xf32>
    %94 = vector.shape_cast %91 : vector<80x16xf32> to vector<1x80x16xf32>
    tpu.vector_store %arg6[%c0_51, %c0_52, %c0_53], %94 {strides = array<i32>} : memref<1x80x16xf32, #tpu.memory_space<vmem>>, vector<1x80x16xf32>,
    return
  }
  func.func @transform_0(%arg0: i32, %arg1: i32) -> (i32, i32, i32) {
    %c0_i32 = arith.constant 0 : i32
    %c0_i32_0 = arith.constant 0 : i32
    %c0_i32_1 = arith.constant 0 : i32
    return %arg0, %c0_i32, %c0_i32_0 : i32, i32, i32
  }
  func.func @transform_1(%arg0: i32, %arg1: i32) -> (i32, i32, i32) {
    %c0_i32 = arith.constant 0 : i32
    %c0_i32_0 = arith.constant 0 : i32
    %c0_i32_1 = arith.constant 0 : i32
    %c0_i32_2 = arith.constant 0 : i32
    return %c0_i32, %c0_i32_0, %c0_i32_1 : i32, i32, i32
  }
  func.func @transform_2(%arg0: i32, %arg1: i32) -> (i32, i32) {
    %c0_i32 = arith.constant 0 : i32
    %c0_i32_0 = arith.constant 0 : i32
    %c0_i32_1 = arith.constant 0 : i32
    return %c0_i32, %c0_i32_0 : i32, i32
  }
  func.func @transform_3(%arg0: i32, %arg1: i32) -> (i32, i32, i32) {
    %c0_i32 = arith.constant 0 : i32
    %c0_i32_0 = arith.constant 0 : i32
    return %arg0, %arg1, %c0_i32 : i32, i32, i32
  }
  func.func @transform_4(%arg0: i32, %arg1: i32) -> (i32, i32, i32) {
    %c0_i32 = arith.constant 0 : i32
    %c0_i32_0 = arith.constant 0 : i32
    return %arg0, %arg1, %c0_i32 : i32, i32, i32
  }
}

</mosaic_0001>

<llo_original>
// kernel: _lambda_.2
$region0: #{_lambda_.2}
  #allocation0 [shape = 'u32[]', space=smem, size = 0x4, offset = 0x4, fixed_abs, tag = 'smem constant byte address 0x4 - core index']
  #allocation1 [shape = 'u32[144,128]{1,0:T(1,128)}', space=vmem, size = 0x12000, scoped, tag = 'internal scratch']
  %s0 = inlined_call_operand.vmem [shape: f32[2,82,16], index: 0, kind: input, shape index: {}]
  %s1 = inlined_call_operand.vmem [shape: bf16[4,16,8], index: 1, kind: input, shape index: {}]
  %s2 = inlined_call_operand.vmem [shape: f32[1,8], index: 2, kind: input, shape index: {}]
  %s3 = inlined_call_operand.vmem [shape: f32[2,72,8], index: 3, kind: output, shape index: {}]
  %s4 = sld [smem:[#allocation0]]
  $region45: #{_lambda_.2} parent=0
    _
  %s6 = ssub.s32 1, %s4
  %s7 = scalar_select 0, %s6, %s4
  loop: start=0, step=1, limit=4
  $region2: #{_lambda_.2} parent=0 // loop_pre_header
    _
  $region3: #{_lambda_.2} parent=0 // loop_header
    %s9 = sphi 0, %s13
    %p10 = scmp.ge.s32.totalorder %s9, 4
    %s16 = sphi 0, %s28
    %s17 = sphi 0, %s24
    %s18 = sphi 0, %s16
    %s19 = sphi 0, %s17
    %s20 = sphi 0, %s18
    %s21 = sphi 0, %s19
    %s31 = sphi 0, %s33
    %s34 = sphi 0, %s31
    %s35 = sphi 0, %s34
    %s51 = sphi 0, %s35
    %s55 = sphi 0, %s55
    %s57 = sphi 0, %s55
    %s58 = sphi 0, %s57
    %s72 = sphi 0, %s58
    %s76 = sphi 0, %s76
    %s78 = sphi 0, %s76
    %s79 = sphi 0, %s78
    %s93 = sphi 0, %s79
    %s101 = sphi 0, %s103
    %s104 = sphi 0, %s101
    %s105 = sphi 0, %s104
    %s121 = sphi 0, %s105
  $region4: #{_lambda_.2} parent=0 // loop_header_branch
    %12 = sbr.rel (%p10) target = $region8
  $region5: #{_lambda_.2} parent=0 // loop_body
    %s14 = ssub.s32 %s9, 1
    %s15 = ssub.s32 %s9, 2
    %s22 = sadd.s32 1, %s17
    %p23 = scmp.ge.s32.totalorder %s22, 1
    %s24 = scalar_select %p23, 0, %s22
    %s25 = sadd.s32 1, %s16
    %s26 = scalar_select %p23, %s25, %s16
    %p27 = scmp.ge.s32.totalorder %s26, 2
    %s28 = scalar_select %p27, 0, %s26
    %s29 = ssub.s32 %s16, %s28
    %p30 = scmp.eq.s32.totalorder %s29, 0
    %s32 = sadd.s32 %s31, 1
    %s33 = scalar_select %p30, %s31, %s32
    %p36 = pneg %p30
    %p37 = scmp.eq.s32.totalorder %s9, 1
    %p38 = por %p36, %p37
    %p39 = scmp.ne.s32.totalorder %s31, %s34
    %p40 = scmp.eq.s32.totalorder %s9, 0
    %p41 = por %p39, %p40
    %p42 = scmp.ne.s32.totalorder %s31, %s34
    %p43 = scmp.eq.s32.totalorder %s14, 1
    %p44 = por %p42, %p43
    %p45 = scmp.ne.s32.totalorder %s34, %s35
    %p46 = scmp.eq.s32.totalorder %s14, 0
    %p47 = por %p45, %p46
    %p48 = scmp.ne.s32.totalorder %s34, %s35
    %p49 = scmp.eq.s32.totalorder %s15, 1
    %p50 = por %p48, %p49
    %p52 = scmp.ne.s32.totalorder %s35, %s51
    %p53 = scmp.eq.s32.totalorder %s15, 0
    %p54 = por %p52, %p53
    %s56 = sadd.s32 %s55, 1
    %p59 = scmp.eq.s32.totalorder %s9, 1
    %p60 = scmp.ne.s32.totalorder %s55, %s57
    %p61 = scmp.eq.s32.totalorder %s9, 0
    %p62 = por %p60, %p61
    %p63 = scmp.ne.s32.totalorder %s55, %s57
    %p64 = scmp.eq.s32.totalorder %s14, 1
    %p65 = por %p63, %p64
    %p66 = scmp.ne.s32.totalorder %s57, %s58
    %p67 = scmp.eq.s32.totalorder %s14, 0
    %p68 = por %p66, %p67
    %p69 = scmp.ne.s32.totalorder %s57, %s58
    %p70 = scmp.eq.s32.totalorder %s15, 1
    %p71 = por %p69, %p70
    %p73 = scmp.ne.s32.totalorder %s58, %s72
    %p74 = scmp.eq.s32.totalorder %s15, 0
    %p75 = por %p73, %p74
    %s77 = sadd.s32 %s76, 1
    %p80 = scmp.eq.s32.totalorder %s9, 1
    %p81 = scmp.ne.s32.totalorder %s76, %s78
    %p82 = scmp.eq.s32.totalorder %s9, 0
    %p83 = por %p81, %p82
    %p84 = scmp.ne.s32.totalorder %s76, %s78
    %p85 = scmp.eq.s32.totalorder %s14, 1
    %p86 = por %p84, %p85
    %p87 = scmp.ne.s32.totalorder %s78, %s79
    %p88 = scmp.eq.s32.totalorder %s14, 0
    %p89 = por %p87, %p88
    %p90 = scmp.ne.s32.totalorder %s78, %s79
    %p91 = scmp.eq.s32.totalorder %s15, 1
    %p92 = por %p90, %p91
    %p94 = scmp.ne.s32.totalorder %s79, %s93
    %p95 = scmp.eq.s32.totalorder %s15, 0
    %p96 = por %p94, %p95
    %s97 = ssub.s32 %s16, %s28
    %s98 = ssub.s32 %s17, %s24
    %s99 = sor.u32 %s97, %s98
    %p100 = scmp.eq.s32.totalorder %s99, 0
    %s102 = sadd.s32 %s101, 1
    %s103 = scalar_select %p100, %s101, %s102
    %p106 = pneg %p100
    %p107 = scmp.eq.s32.totalorder %s9, 1
    %p108 = por %p106, %p107
    %p109 = scmp.ne.s32.totalorder %s101, %s104
    %p110 = scmp.eq.s32.totalorder %s9, 0
    %p111 = por %p109, %p110
    %p112 = scmp.ne.s32.totalorder %s101, %s104
    %p113 = scmp.eq.s32.totalorder %s14, 1
    %p114 = por %p112, %p113
    %p115 = scmp.ne.s32.totalorder %s104, %s105
    %p116 = scmp.eq.s32.totalorder %s14, 0
    %p117 = por %p115, %p116
    %p118 = scmp.ne.s32.totalorder %s104, %s105
    %p119 = scmp.eq.s32.totalorder %s15, 1
    %p120 = por %p118, %p119
    %p122 = scmp.ne.s32.totalorder %s105, %s121
    %p123 = scmp.eq.s32.totalorder %s15, 0
    %p124 = por %p122, %p123
    %p125 = scmp.le.s32.totalorder 1, %s9
    %p126 = scmp.lt.s32.totalorder %s9, 3
    %p127 = pnand %p125, %p126
    %p128 = pneg %p127
    // Predicated region
    $region9: #{_lambda_.2} parent=5 // pred_check
      _
    $region10: #{_lambda_.2} parent=5 // pred_check_branch
      %130 = sbr.rel (%p127) target = $region12
    $region11: #{_lambda_.2} parent=5 // pred_region
      %s131 = ssub.s32 %s9, 1
      // Predicated region
      $region13: #{_lambda_.2} parent=11 // pred_check
        %p132 = pneg %p68
      $region14: #{_lambda_.2} parent=11 // pred_check_branch
        %134 = sbr.rel (%p132) target = $region16
      $region15: #{_lambda_.2} parent=11 // pred_region
        _
      $region16: #{_lambda_.2} parent=11 // pred_fallthru
        _
      // Predicated region
      $region17: #{_lambda_.2} parent=11 // pred_check
        %p135 = pneg %p89
      $region18: #{_lambda_.2} parent=11 // pred_check_branch
        %137 = sbr.rel (%p135) target = $region20
      $region19: #{_lambda_.2} parent=11 // pred_region
        _
      $region20: #{_lambda_.2} parent=11 // pred_fallthru
        _
    $region12: #{_lambda_.2} parent=5 // pred_fallthru
      _
    %p138 = scmp.lt.s32.totalorder %s9, 2
    // Predicated region
    $region21: #{_lambda_.2} parent=5 // pred_check
      %p139 = pneg %p138
    $region22: #{_lambda_.2} parent=5 // pred_check_branch
      %141 = sbr.rel (%p139) target = $region24
    $region23: #{_lambda_.2} parent=5 // pred_region
      // Predicated region
      $region25: #{_lambda_.2} parent=23 // pred_check
        %p142 = pneg %p41
      $region26: #{_lambda_.2} parent=23 // pred_check_branch
        %144 = sbr.rel (%p142) target = $region28
      $region27: #{_lambda_.2} parent=23 // pred_region
        %p145 = scmp.lt.s32.totalorder %s16, 1
        %s146 = scalar_select %p145, %s16, 1
        %s147 = smul.addr %s146, 11
        %s148 = smul.addr %s147, 8
        %s149 = scalar_lea.vmem %s0, %s148
      $region28: #{_lambda_.2} parent=23 // pred_fallthru
        _
    $region24: #{_lambda_.2} parent=5 // pred_fallthru
      _
    %p150 = scmp.le.s32.totalorder 1, %s9
    %p151 = scmp.lt.s32.totalorder %s9, 3
    %p152 = pnand %p150, %p151
    %p153 = pneg %p152
    // Predicated region
    $region29: #{_lambda_.2} parent=5 // pred_check
      _
    $region30: #{_lambda_.2} parent=5 // pred_check_branch
      %155 = sbr.rel (%p152) target = $region32
    $region31: #{_lambda_.2} parent=5 // pred_region
      %s156 = ssub.s32 %s9, 1
      %p157 = scmp.lt.s32.totalorder %s18, 1
      %s158 = scalar_select %p157, %s18, 1
      %s159 = smul.addr %s158, 11
      %s160 = smul.addr %s159, 8
      %s161 = scalar_lea.vmem %s0, %s160
      %p162 = pneg %p47
      %p163 = pneg %p44
      %p164 = pneg %p68
      %p165 = pneg %p65
      %p166 = pneg %p89
      %p167 = pneg %p86
      %p168 = pneg %p117
      %p169 = pneg %p114
      %s170 = smul.u32 9, %s19
      %p171 = scmp.lt.s32.totalorder %s18, 1
      %s172 = scalar_select %p171, %s18, 1
      %p173 = scmp.lt.s32.totalorder %s170, 8
      %s174 = scalar_select %p173, %s170, 8
      %s175 = smul.addr %s172, 9
      %s176 = sadd.s32 %s174, %s175
      %s177 = smul.addr %s176, 8
      %s178 = scalar_lea.vmem %s3, %s177
      %p179 = scmp.lt.s32.totalorder %s18, 1
      %s180 = scalar_select %p179, %s18, 1
      %s181 = smul.addr %s180, 11
      %s182 = smul.addr %s181, 8
      %s183 = scalar_lea.vmem %s0, %s182
      %s184 = smul.u32 9, %s19
      %p185 = scmp.lt.s32.totalorder %s18, 1
      %s186 = scalar_select %p185, %s18, 1
      %p187 = scmp.lt.s32.totalorder %s184, 8
      %s188 = scalar_select %p187, %s184, 8
      %s189 = smul.addr %s186, 9
      %s190 = sadd.s32 %s188, %s189
      %s191 = smul.addr %s190, 8
      %s192 = scalar_lea.vmem %s3, %s191
      %s193 = smul.u32 9, %s19
      %s195 = smul.u32 %s19, 72
      %s196 = scalar_lea.vmem %s183, %s195
      %v197 = vld [vmem:[%s196] sm:$0xff]
      %v198 = vld [vmem:[%s196 + $0x8] sm:$0xff]
      %v199 = vld [vmem:[%s196 + $0x10] sm:$0xff]
      %v200 = vld [vmem:[%s196 + $0x18] sm:$0xff]
      %v201 = vld [vmem:[%s196 + $0x20] sm:$0xff]
      %v202 = vld [vmem:[%s196 + $0x28] sm:$0xff]
      %v203 = vld [vmem:[%s196 + $0x30] sm:$0xff]
      %v204 = vld [vmem:[%s196 + $0x38] sm:$0xff]
      %v205 = vld [vmem:[%s196 + $0x40] sm:$0xff]
      %v206 = vpack.c.bf16 %v198, %v197
      %v207 = vpack.c.bf16 %v200, %v199
      %v208 = vpack.c.bf16 %v202, %v201
      %v209 = vpack.c.bf16 %v204, %v203
      %v210 = vpack.c.bf16 %v205, %v205
      %v211 = vld [vmem:[%s1] sm:$0xf]
      %v212 = vld [vmem:[%s1 + $0x4] sm:$0xf]
      %s213 = sadd.s32 %s195, 1
      %s214 = scalar_lea.vmem %s183, %s213
      %v215 = vld [vmem:[%s214] sm:$0xff]
      %v216 = vld [vmem:[%s214 + $0x8] sm:$0xff]
      %v217 = vld [vmem:[%s214 + $0x10] sm:$0xff]
      %v218 = vld [vmem:[%s214 + $0x18] sm:$0xff]
      %v219 = vld [vmem:[%s214 + $0x20] sm:$0xff]
      %v220 = vld [vmem:[%s214 + $0x28] sm:$0xff]
      %v221 = vld [vmem:[%s214 + $0x30] sm:$0xff]
      %v222 = vld [vmem:[%s214 + $0x38] sm:$0xff]
      %v223 = vld [vmem:[%s214 + $0x40] sm:$0xff]
      %v224 = vpack.c.bf16 %v216, %v215
      %v225 = vpack.c.bf16 %v218, %v217
      %v226 = vpack.c.bf16 %v220, %v219
      %v227 = vpack.c.bf16 %v222, %v221
      %v228 = vpack.c.bf16 %v223, %v223
      %s229 = scalar_lea.vmem %s1, 8
      %v230 = vld [vmem:[%s229] sm:$0xf]
      %v231 = vld [vmem:[%s229 + $0x4] sm:$0xf]
      %v234 = vunpack.c.l.b16 %v230
      %v235 = vunpack.c.l.b16 %v231
      %v236 = vpack.c.b16 %v235, %v234
      %vm238 = vcmask 130048
      %v240 = vsel %vm238, %v224, 0
      %v243 = vsel %vm238, %v225, 0
      %v246 = vsel %vm238, %v226, 0
      %v249 = vsel %vm238, %v227, 0
      %v252 = vsel %vm238, %v228, 0
      %254 = vmatprep.subr.bf16.mxu0 0
      %255 = vmatpush1.bf16.msra.mxu0 0
      %256 = vmatprep.subr.bf16.mxu0 0
      %257 = vmatpush1.bf16.msra.mxu0 0
      %258 = vmatprep.subr.bf16.mxu0 0
      %259 = vmatpush1.bf16.msra.mxu0 0
      %260 = vmatprep.subr.bf16.mxu0 0
      %261 = vmatpush1.bf16.msra.mxu0 0
      %262 = vmatprep.subr.bf16.mxu0 0
      %263 = vmatpush1.bf16.msra.mxu0 0
      %264 = vmatprep.subr.bf16.mxu0 0
      %265 = vmatpush1.bf16.msra.mxu0 0
      %266 = vmatprep.subr.bf16.mxu0 0
      %267 = vmatpush1.bf16.msra.mxu0 0
      %268 = vmatprep.subr.bf16.mxu0 0
      %269 = vmatpush1.bf16.msra.mxu0 %v236
      %270 = vmatprep.subr.bf16.mxu0 0
      %271 = vmatpush2.bf16.msra.mxu0 0
      %272 = vmatprep.subr.bf16.mxu0 0
      %273 = vmatpush2.bf16.msra.mxu0 0
      %274 = vmatprep.subr.bf16.mxu0 0
      %275 = vmatpush2.bf16.msra.mxu0 0
      %276 = vmatprep.subr.bf16.mxu0 0
      %277 = vmatpush2.bf16.msra.mxu0 0
      %278 = vmatprep.subr.bf16.mxu0 0
      %279 = vmatpush2.bf16.msra.mxu0 0
      %280 = vmatprep.subr.bf16.mxu0 0
      %281 = vmatpush2.bf16.msra.mxu0 0
      %282 = vmatprep.subr.bf16.mxu0 0
      %283 = vmatpush2.bf16.msra.mxu0 0
      %284 = vmatprep.subr.bf16.mxu0 0
      %285 = vmatpush2.bf16.msra.mxu0 0
      %286 = vmatprep.mubr.bf16.mxu0 0
      %287 = vmatmul.mubr.bf16.gmra.mxu0 %v240
      %v288 = vpop.f32.mrf.mxu0
      %v289 = vadd.f32 0.0, %v288
      %v290 = vpop.f32.mrf.mxu0
      %v291 = vpop.f32.mrf.mxu0
      %v292 = vadd.f32 0.0, %v291
      %v293 = vpop.f32.mrf.mxu0
      %294 = vmatprep.mubr.bf16.mxu0 0
      %295 = vmatmul.mubr.bf16.gmra.mxu0 %v243
      %v296 = vpop.f32.mrf.mxu0
      %v297 = vadd.f32 0.0, %v296
      %v298 = vpop.f32.mrf.mxu0
      %v299 = vpop.f32.mrf.mxu0
      %v300 = vadd.f32 0.0, %v299
      %v301 = vpop.f32.mrf.mxu0
      %302 = vmatprep.mubr.bf16.mxu0 0
      %303 = vmatmul.mubr.bf16.gmra.mxu0 %v246
      %v304 = vpop.f32.mrf.mxu0
      %v305 = vadd.f32 0.0, %v304
      %v306 = vpop.f32.mrf.mxu0
      %v307 = vpop.f32.mrf.mxu0
      %v308 = vadd.f32 0.0, %v307
      %v309 = vpop.f32.mrf.mxu0
      %310 = vmatprep.mubr.bf16.mxu0 0
      %311 = vmatmul.mubr.bf16.gmra.mxu0 %v249
      %v312 = vpop.f32.mrf.mxu0
      %v313 = vadd.f32 0.0, %v312
      %v314 = vpop.f32.mrf.mxu0
      %v315 = vpop.f32.mrf.mxu0
      %v316 = vadd.f32 0.0, %v315
      %v317 = vpop.f32.mrf.mxu0
      %318 = vmatprep.mubr.bf16.mxu0 0
      %319 = vmatmul.mubr.bf16.gmra.mxu0 %v252
      %v320 = vpop.f32.mrf.mxu0
      %v321 = vadd.f32 0.0, %v320
      %v322 = vpop.f32.mrf.mxu0
      %v323 = vpop.f32.mrf.mxu0
      %v324 = vpop.f32.mrf.mxu0
      %325 = vdwg.mxu0
      %v328 = vunpack.c.l.b16 %v211
      %v329 = vunpack.c.l.b16 %v212
      %v330 = vpack.c.b16 %v329, %v328
      %v333 = vsel %vm238, %v206, 0
      %v336 = vsel %vm238, %v207, 0
      %v339 = vsel %vm238, %v208, 0
      %v342 = vsel %vm238, %v209, 0
      %v345 = vsel %vm238, %v210, 0
      %347 = vmatprep.subr.bf16.mxu0 0
      %348 = vmatpush1.bf16.msra.mxu0 0
      %349 = vmatprep.subr.bf16.mxu0 0
      %350 = vmatpush1.bf16.msra.mxu0 0
      %351 = vmatprep.subr.bf16.mxu0 0
      %352 = vmatpush1.bf16.msra.mxu0 0
      %353 = vmatprep.subr.bf16.mxu0 0
      %354 = vmatpush1.bf16.msra.mxu0 0
      %355 = vmatprep.subr.bf16.mxu0 0
      %356 = vmatpush1.bf16.msra.mxu0 0
      %357 = vmatprep.subr.bf16.mxu0 0
      %358 = vmatpush1.bf16.msra.mxu0 0
      %359 = vmatprep.subr.bf16.mxu0 0
      %360 = vmatpush1.bf16.msra.mxu0 0
      %361 = vmatprep.subr.bf16.mxu0 0
      %362 = vmatpush1.bf16.msra.mxu0 %v330
      %363 = vmatprep.subr.bf16.mxu0 0
      %364 = vmatpush2.bf16.msra.mxu0 0
      %365 = vmatprep.subr.bf16.mxu0 0
      %366 = vmatpush2.bf16.msra.mxu0 0
      %367 = vmatprep.subr.bf16.mxu0 0
      %368 = vmatpush2.bf16.msra.mxu0 0
      %369 = vmatprep.subr.bf16.mxu0 0
      %370 = vmatpush2.bf16.msra.mxu0 0
      %371 = vmatprep.subr.bf16.mxu0 0
      %372 = vmatpush2.bf16.msra.mxu0 0
      %373 = vmatprep.subr.bf16.mxu0 0
      %374 = vmatpush2.bf16.msra.mxu0 0
      %375 = vmatprep.subr.bf16.mxu0 0
      %376 = vmatpush2.bf16.msra.mxu0 0
      %377 = vmatprep.subr.bf16.mxu0 0
      %378 = vmatpush2.bf16.msra.mxu0 0
      %379 = vmatprep.mubr.bf16.mxu0 0
      %380 = vmatmul.mubr.bf16.gmra.mxu0 %v333
      %v381 = vpop.f32.mrf.mxu0
      %v382 = vadd.f32 %v289, %v381
      %v383 = vpop.f32.mrf.mxu0
      %v384 = vpop.f32.mrf.mxu0
      %v385 = vadd.f32 %v292, %v384
      %v386 = vpop.f32.mrf.mxu0
      %387 = vmatprep.mubr.bf16.mxu0 0
      %388 = vmatmul.mubr.bf16.gmra.mxu0 %v336
      %v389 = vpop.f32.mrf.mxu0
      %v390 = vadd.f32 %v297, %v389
      %v391 = vpop.f32.mrf.mxu0
      %v392 = vpop.f32.mrf.mxu0
      %v393 = vadd.f32 %v300, %v392
      %v394 = vpop.f32.mrf.mxu0
      %395 = vmatprep.mubr.bf16.mxu0 0
      %396 = vmatmul.mubr.bf16.gmra.mxu0 %v339
      %v397 = vpop.f32.mrf.mxu0
      %v398 = vadd.f32 %v305, %v397
      %v399 = vpop.f32.mrf.mxu0
      %v400 = vpop.f32.mrf.mxu0
      %v401 = vadd.f32 %v308, %v400
      %v402 = vpop.f32.mrf.mxu0
      %403 = vmatprep.mubr.bf16.mxu0 0
      %404 = vmatmul.mubr.bf16.gmra.mxu0 %v342
      %v405 = vpop.f32.mrf.mxu0
      %v406 = vadd.f32 %v313, %v405
      %v407 = vpop.f32.mrf.mxu0
      %v408 = vpop.f32.mrf.mxu0
      %v409 = vadd.f32 %v316, %v408
      %v410 = vpop.f32.mrf.mxu0
      %411 = vmatprep.mubr.bf16.mxu0 0
      %412 = vmatmul.mubr.bf16.gmra.mxu0 %v345
      %v413 = vpop.f32.mrf.mxu0
      %v414 = vadd.f32 %v321, %v413
      %v415 = vpop.f32.mrf.mxu0
      %v416 = vpop.f32.mrf.mxu0
      %v417 = vpop.f32.mrf.mxu0
      %418 = vdwg.mxu0
      %s419 = sadd.s32 %s195, 9
      %s420 = scalar_lea.vmem %s183, %s419
      %v421 = vld [vmem:[%s420] sm:$0xff]
      %v422 = vld [vmem:[%s420 + $0x8] sm:$0xff]
      %v423 = vld [vmem:[%s420 + $0x10] sm:$0xff]
      %v424 = vld [vmem:[%s420 + $0x18] sm:$0xff]
      %v425 = vld [vmem:[%s420 + $0x20] sm:$0xff]
      %v426 = vld [vmem:[%s420 + $0x28] sm:$0xff]
      %v427 = vld [vmem:[%s420 + $0x30] sm:$0xff]
      %v428 = vld [vmem:[%s420 + $0x38] sm:$0xff]
      %v429 = vld [vmem:[%s420 + $0x40] sm:$0xff]
      %v430 = vpack.c.bf16 %v422, %v421
      %v431 = vpack.c.bf16 %v424, %v423
      %v432 = vpack.c.bf16 %v426, %v425
      %v433 = vpack.c.bf16 %v428, %v427
      %v434 = vpack.c.bf16 %v429, %v429
      %s435 = scalar_lea.vmem %s1, 16
      %v436 = vld [vmem:[%s435] sm:$0xf]
      %v437 = vld [vmem:[%s435 + $0x4] sm:$0xf]
      %v440 = vunpack.c.l.b16 %v436
      %v441 = vunpack.c.l.b16 %v437
      %v442 = vpack.c.b16 %v441, %v440
      %v445 = vsel %vm238, %v430, 0
      %v448 = vsel %vm238, %v431, 0
      %v451 = vsel %vm238, %v432, 0
      %v454 = vsel %vm238, %v433, 0
      %v457 = vsel %vm238, %v434, 0
      %459 = vmatprep.subr.bf16.mxu0 0
      %460 = vmatpush1.bf16.msra.mxu0 0
      %461 = vmatprep.subr.bf16.mxu0 0
      %462 = vmatpush1.bf16.msra.mxu0 0
      %463 = vmatprep.subr.bf16.mxu0 0
      %464 = vmatpush1.bf16.msra.mxu0 0
      %465 = vmatprep.subr.bf16.mxu0 0
      %466 = vmatpush1.bf16.msra.mxu0 0
      %467 = vmatprep.subr.bf16.mxu0 0
      %468 = vmatpush1.bf16.msra.mxu0 0
      %469 = vmatprep.subr.bf16.mxu0 0
      %470 = vmatpush1.bf16.msra.mxu0 0
      %471 = vmatprep.subr.bf16.mxu0 0
      %472 = vmatpush1.bf16.msra.mxu0 0
      %473 = vmatprep.subr.bf16.mxu0 0
      %474 = vmatpush1.bf16.msra.mxu0 %v442
      %475 = vmatprep.subr.bf16.mxu0 0
      %476 = vmatpush2.bf16.msra.mxu0 0
      %477 = vmatprep.subr.bf16.mxu0 0
      %478 = vmatpush2.bf16.msra.mxu0 0
      %479 = vmatprep.subr.bf16.mxu0 0
      %480 = vmatpush2.bf16.msra.mxu0 0
      %481 = vmatprep.subr.bf16.mxu0 0
      %482 = vmatpush2.bf16.msra.mxu0 0
      %483 = vmatprep.subr.bf16.mxu0 0
      %484 = vmatpush2.bf16.msra.mxu0 0
      %485 = vmatprep.subr.bf16.mxu0 0
      %486 = vmatpush2.bf16.msra.mxu0 0
      %487 = vmatprep.subr.bf16.mxu0 0
      %488 = vmatpush2.bf16.msra.mxu0 0
      %489 = vmatprep.subr.bf16.mxu0 0
      %490 = vmatpush2.bf16.msra.mxu0 0
      %491 = vmatprep.mubr.bf16.mxu0 0
      %492 = vmatmul.mubr.bf16.gmra.mxu0 %v445
      %v493 = vpop.f32.mrf.mxu0
      %v494 = vadd.f32 0.0, %v493
      %v495 = vpop.f32.mrf.mxu0
      %v496 = vpop.f32.mrf.mxu0
      %v497 = vadd.f32 0.0, %v496
      %v498 = vpop.f32.mrf.mxu0
      %499 = vmatprep.mubr.bf16.mxu0 0
      %500 = vmatmul.mubr.bf16.gmra.mxu0 %v448
      %v501 = vpop.f32.mrf.mxu0
      %v502 = vadd.f32 0.0, %v501
      %v503 = vpop.f32.mrf.mxu0
      %v504 = vpop.f32.mrf.mxu0
      %v505 = vadd.f32 0.0, %v504
      %v506 = vpop.f32.mrf.mxu0
      %507 = vmatprep.mubr.bf16.mxu0 0
      %508 = vmatmul.mubr.bf16.gmra.mxu0 %v451
      %v509 = vpop.f32.mrf.mxu0
      %v510 = vadd.f32 0.0, %v509
      %v511 = vpop.f32.mrf.mxu0
      %v512 = vpop.f32.mrf.mxu0
      %v513 = vadd.f32 0.0, %v512
      %v514 = vpop.f32.mrf.mxu0
      %515 = vmatprep.mubr.bf16.mxu0 0
      %516 = vmatmul.mubr.bf16.gmra.mxu0 %v454
      %v517 = vpop.f32.mrf.mxu0
      %v518 = vadd.f32 0.0, %v517
      %v519 = vpop.f32.mrf.mxu0
      %v520 = vpop.f32.mrf.mxu0
      %v521 = vadd.f32 0.0, %v520
      %v522 = vpop.f32.mrf.mxu0
      %523 = vmatprep.mubr.bf16.mxu0 0
      %524 = vmatmul.mubr.bf16.gmra.mxu0 %v457
      %v525 = vpop.f32.mrf.mxu0
      %v526 = vadd.f32 0.0, %v525
      %v527 = vpop.f32.mrf.mxu0
      %v528 = vpop.f32.mrf.mxu0
      %v529 = vpop.f32.mrf.mxu0
      %530 = vdwg.mxu0
      %v531 = vadd.f32 %v382, %v494
      %v532 = vadd.f32 %v385, %v497
      %v533 = vadd.f32 %v390, %v502
      %v534 = vadd.f32 %v393, %v505
      %v535 = vadd.f32 %v398, %v510
      %v536 = vadd.f32 %v401, %v513
      %v537 = vadd.f32 %v406, %v518
      %v538 = vadd.f32 %v409, %v521
      %v539 = vadd.f32 %v414, %v526
      %s540 = sadd.s32 %s195, 10
      %s541 = scalar_lea.vmem %s183, %s540
      %v542 = vld [vmem:[%s541] sm:$0xff]
      %v543 = vld [vmem:[%s541 + $0x8] sm:$0xff]
      %v544 = vld [vmem:[%s541 + $0x10] sm:$0xff]
      %v545 = vld [vmem:[%s541 + $0x18] sm:$0xff]
      %v546 = vld [vmem:[%s541 + $0x20] sm:$0xff]
      %v547 = vld [vmem:[%s541 + $0x28] sm:$0xff]
      %v548 = vld [vmem:[%s541 + $0x30] sm:$0xff]
      %v549 = vld [vmem:[%s541 + $0x38] sm:$0xff]
      %v550 = vld [vmem:[%s541 + $0x40] sm:$0xff]
      %v551 = vpack.c.bf16 %v543, %v542
      %v552 = vpack.c.bf16 %v545, %v544
      %v553 = vpack.c.bf16 %v547, %v546
      %v554 = vpack.c.bf16 %v549, %v548
      %v555 = vpack.c.bf16 %v550, %v550
      %s556 = scalar_lea.vmem %s1, 24
      %v557 = vld [vmem:[%s556] sm:$0xf]
      %v558 = vld [vmem:[%s556 + $0x4] sm:$0xf]
      %v561 = vunpack.c.l.b16 %v557
      %v562 = vunpack.c.l.b16 %v558
      %v563 = vpack.c.b16 %v562, %v561
      %v566 = vsel %vm238, %v551, 0
      %v569 = vsel %vm238, %v552, 0
      %v572 = vsel %vm238, %v553, 0
      %v575 = vsel %vm238, %v554, 0
      %v578 = vsel %vm238, %v555, 0
      %580 = vmatprep.subr.bf16.mxu0 0
      %581 = vmatpush1.bf16.msra.mxu0 0
      %582 = vmatprep.subr.bf16.mxu0 0
      %583 = vmatpush1.bf16.msra.mxu0 0
      %584 = vmatprep.subr.bf16.mxu0 0
      %585 = vmatpush1.bf16.msra.mxu0 0
      %586 = vmatprep.subr.bf16.mxu0 0
      %587 = vmatpush1.bf16.msra.mxu0 0
      %588 = vmatprep.subr.bf16.mxu0 0
      %589 = vmatpush1.bf16.msra.mxu0 0
      %590 = vmatprep.subr.bf16.mxu0 0
      %591 = vmatpush1.bf16.msra.mxu0 0
      %592 = vmatprep.subr.bf16.mxu0 0
      %593 = vmatpush1.bf16.msra.mxu0 0
      %594 = vmatprep.subr.bf16.mxu0 0
      %595 = vmatpush1.bf16.msra.mxu0 %v563
      %596 = vmatprep.subr.bf16.mxu0 0
      %597 = vmatpush2.bf16.msra.mxu0 0
      %598 = vmatprep.subr.bf16.mxu0 0
      %599 = vmatpush2.bf16.msra.mxu0 0
      %600 = vmatprep.subr.bf16.mxu0 0
      %601 = vmatpush2.bf16.msra.mxu0 0
      %602 = vmatprep.subr.bf16.mxu0 0
      %603 = vmatpush2.bf16.msra.mxu0 0
      %604 = vmatprep.subr.bf16.mxu0 0
      %605 = vmatpush2.bf16.msra.mxu0 0
      %606 = vmatprep.subr.bf16.mxu0 0
      %607 = vmatpush2.bf16.msra.mxu0 0
      %608 = vmatprep.subr.bf16.mxu0 0
      %609 = vmatpush2.bf16.msra.mxu0 0
      %610 = vmatprep.subr.bf16.mxu0 0
      %611 = vmatpush2.bf16.msra.mxu0 0
      %612 = vmatprep.mubr.bf16.mxu0 0
      %613 = vmatmul.mubr.bf16.gmra.mxu0 %v566
      %v614 = vpop.f32.mrf.mxu0
      %v615 = vadd.f32 0.0, %v614
      %v616 = vpop.f32.mrf.mxu0
      %v617 = vpop.f32.mrf.mxu0
      %v618 = vadd.f32 0.0, %v617
      %v619 = vpop.f32.mrf.mxu0
      %620 = vmatprep.mubr.bf16.mxu0 0
      %621 = vmatmul.mubr.bf16.gmra.mxu0 %v569
      %v622 = vpop.f32.mrf.mxu0
      %v623 = vadd.f32 0.0, %v622
      %v624 = vpop.f32.mrf.mxu0
      %v625 = vpop.f32.mrf.mxu0
      %v626 = vadd.f32 0.0, %v625
      %v627 = vpop.f32.mrf.mxu0
      %628 = vmatprep.mubr.bf16.mxu0 0
      %629 = vmatmul.mubr.bf16.gmra.mxu0 %v572
      %v630 = vpop.f32.mrf.mxu0
      %v631 = vadd.f32 0.0, %v630
      %v632 = vpop.f32.mrf.mxu0
      %v633 = vpop.f32.mrf.mxu0
      %v634 = vadd.f32 0.0, %v633
      %v635 = vpop.f32.mrf.mxu0
      %636 = vmatprep.mubr.bf16.mxu0 0
      %637 = vmatmul.mubr.bf16.gmra.mxu0 %v575
      %v638 = vpop.f32.mrf.mxu0
      %v639 = vadd.f32 0.0, %v638
      %v640 = vpop.f32.mrf.mxu0
      %v641 = vpop.f32.mrf.mxu0
      %v642 = vadd.f32 0.0, %v641
      %v643 = vpop.f32.mrf.mxu0
      %644 = vmatprep.mubr.bf16.mxu0 0
      %645 = vmatmul.mubr.bf16.gmra.mxu0 %v578
      %v646 = vpop.f32.mrf.mxu0
      %v647 = vadd.f32 0.0, %v646
      %v648 = vpop.f32.mrf.mxu0
      %v649 = vpop.f32.mrf.mxu0
      %v650 = vpop.f32.mrf.mxu0
      %651 = vdwg.mxu0
      %v652 = vadd.f32 %v531, %v615
      %v653 = vadd.f32 %v532, %v618
      %v654 = vadd.f32 %v533, %v623
      %v655 = vadd.f32 %v534, %v626
      %v656 = vadd.f32 %v535, %v631
      %v657 = vadd.f32 %v536, %v634
      %v658 = vadd.f32 %v537, %v639
      %v659 = vadd.f32 %v538, %v642
      %v660 = vadd.f32 %v539, %v647
      %v661 = vld [vmem:[%s2] sm:$0x1]
      %v663 = vlaneseq
      %v664 = vshrl.u32 %v663, 7
      %v665 = vsub.s32 0, %v664
      %v666 = vrot.slane %v661, %v665
      %v668 = vadd.f32 %v652, %v666
      %v669 = vadd.f32 %v653, %v666
      %v670 = vadd.f32 %v654, %v666
      %v671 = vadd.f32 %v655, %v666
      %v672 = vadd.f32 %v656, %v666
      %v673 = vadd.f32 %v657, %v666
      %v674 = vadd.f32 %v658, %v666
      %v675 = vadd.f32 %v659, %v666
      %v676 = vadd.f32 %v660, %v666
      %v677 = vmax.f32 %v668, 0.0
      %v678 = vmax.f32 %v669, 0.0
      %v679 = vmax.f32 %v670, 0.0
      %v680 = vmax.f32 %v671, 0.0
      %v681 = vmax.f32 %v672, 0.0
      %v682 = vmax.f32 %v673, 0.0
      %v683 = vmax.f32 %v674, 0.0
      %v684 = vmax.f32 %v675, 0.0
      %v685 = vmax.f32 %v676, 0.0
      %vm686 = vcmask 64512
      %687 = vst.msk [vmem:[%s192] sm:$0xff] %vm686, %v677
      %688 = vst.msk [vmem:[%s192 + $0x8] sm:$0xff] %vm686, %v678
      %689 = vst.msk [vmem:[%s192 + $0x10] sm:$0xff] %vm686, %v679
      %690 = vst.msk [vmem:[%s192 + $0x18] sm:$0xff] %vm686, %v680
      %691 = vst.msk [vmem:[%s192 + $0x20] sm:$0xff] %vm686, %v681
      %692 = vst.msk [vmem:[%s192 + $0x28] sm:$0xff] %vm686, %v682
      %693 = vst.msk [vmem:[%s192 + $0x30] sm:$0xff] %vm686, %v683
      %694 = vst.msk [vmem:[%s192 + $0x38] sm:$0xff] %vm686, %v684
      %695 = vst.msk [vmem:[%s192 + $0x40] sm:$0xff] %vm686, %v685
      %s696 = smul.u32 9, %s19
      %p697 = scmp.lt.s32.totalorder %s18, 1
      %s698 = scalar_select %p697, %s18, 1
      %p699 = scmp.lt.s32.totalorder %s696, 8
      %s700 = scalar_select %p699, %s696, 8
      %s701 = smul.addr %s698, 9
      %s702 = sadd.s32 %s700, %s701
      %s703 = smul.addr %s702, 8
      %s704 = scalar_lea.vmem %s3, %s703
      // Predicated region
      $region33: #{_lambda_.2} parent=31 // pred_check
        %p705 = pneg %p114
      $region34: #{_lambda_.2} parent=31 // pred_check_branch
        %707 = sbr.rel (%p705) target = $region36
      $region35: #{_lambda_.2} parent=31 // pred_region
        %s708 = smul.u32 9, %s19
      $region36: #{_lambda_.2} parent=31 // pred_fallthru
        _
    $region32: #{_lambda_.2} parent=5 // pred_fallthru
      _
    %p709 = scmp.le.s32.totalorder 2, %s9
    // Predicated region
    $region37: #{_lambda_.2} parent=5 // pred_check
      %p710 = pneg %p709
    $region38: #{_lambda_.2} parent=5 // pred_check_branch
      %712 = sbr.rel (%p710) target = $region40
    $region39: #{_lambda_.2} parent=5 // pred_region
      %s713 = ssub.s32 %s9, 2
      // Predicated region
      $region41: #{_lambda_.2} parent=39 // pred_check
        %p714 = pneg %p120
      $region42: #{_lambda_.2} parent=39 // pred_check_branch
        %716 = sbr.rel (%p714) target = $region44
      $region43: #{_lambda_.2} parent=39 // pred_region
        %s717 = smul.u32 9, %s21
        %p718 = scmp.lt.s32.totalorder %s20, 1
        %s719 = scalar_select %p718, %s20, 1
        %p720 = scmp.lt.s32.totalorder %s717, 8
        %s721 = scalar_select %p720, %s717, 8
        %s722 = smul.addr %s719, 9
        %s723 = sadd.s32 %s721, %s722
        %s724 = smul.addr %s723, 8
        %s725 = scalar_lea.vmem %s3, %s724
      $region44: #{_lambda_.2} parent=39 // pred_fallthru
        _
    $region40: #{_lambda_.2} parent=5 // pred_fallthru
      _
  $region6: #{_lambda_.2} parent=0 // loop_footer
    %s13 = sadd.s32 1, %s9
  $region7: #{_lambda_.2} parent=0 // loop_footer_branch
    %8 = sbr.rel target = $region3
  $region8: #{_lambda_.2} parent=0 // loop_exit
    _

// kernel: _lambda_.3
$region0: #{_lambda_.3}
  #allocation0 [shape = 'u32[]', space=smem, size = 0x4, offset = 0x4, fixed_abs, tag = 'smem constant byte address 0x4 - core index']
  #allocation1 [shape = 'u32[144,128]{1,0:T(1,128)}', space=vmem, size = 0x12000, scoped, tag = 'internal scratch']
  %s0 = inlined_call_operand.vmem [shape: f32[2,102,8], index: 0, kind: input, shape index: {}]
  %s1 = inlined_call_operand.vmem [shape: bf16[9,8,16], index: 1, kind: input, shape index: {}]
  %s2 = inlined_call_operand.vmem [shape: f32[1,16], index: 2, kind: input, shape index: {}]
  %s3 = inlined_call_operand.vmem [shape: f32[2,80,16], index: 3, kind: input, shape index: {}]
  %s4 = inlined_call_operand.vmem [shape: f32[2,80,16], index: 4, kind: output, shape index: {}]
  %s5 = sld [smem:[#allocation0]]
  $region49: #{_lambda_.3} parent=0
    _
  %s7 = ssub.s32 1, %s5
  %s8 = scalar_select 0, %s7, %s5
  loop: start=0, step=1, limit=4
  $region2: #{_lambda_.3} parent=0 // loop_pre_header
    _
  $region3: #{_lambda_.3} parent=0 // loop_header
    %s10 = sphi 0, %s14
    %p11 = scmp.ge.s32.totalorder %s10, 4
    %s17 = sphi 0, %s29
    %s18 = sphi 0, %s25
    %s19 = sphi 0, %s17
    %s20 = sphi 0, %s18
    %s21 = sphi 0, %s19
    %s22 = sphi 0, %s20
    %s32 = sphi 0, %s34
    %s35 = sphi 0, %s32
    %s36 = sphi 0, %s35
    %s52 = sphi 0, %s36
    %s56 = sphi 0, %s56
    %s58 = sphi 0, %s56
    %s59 = sphi 0, %s58
    %s73 = sphi 0, %s59
    %s77 = sphi 0, %s77
    %s79 = sphi 0, %s77
    %s80 = sphi 0, %s79
    %s94 = sphi 0, %s80
    %s102 = sphi 0, %s104
    %s105 = sphi 0, %s102
    %s106 = sphi 0, %s105
    %s122 = sphi 0, %s106
    %s130 = sphi 0, %s132
    %s133 = sphi 0, %s130
    %s134 = sphi 0, %s133
    %s150 = sphi 0, %s134
  $region4: #{_lambda_.3} parent=0 // loop_header_branch
    %13 = sbr.rel (%p11) target = $region8
  $region5: #{_lambda_.3} parent=0 // loop_body
    %s15 = ssub.s32 %s10, 1
    %s16 = ssub.s32 %s10, 2
    %s23 = sadd.s32 1, %s18
    %p24 = scmp.ge.s32.totalorder %s23, 1
    %s25 = scalar_select %p24, 0, %s23
    %s26 = sadd.s32 1, %s17
    %s27 = scalar_select %p24, %s26, %s17
    %p28 = scmp.ge.s32.totalorder %s27, 2
    %s29 = scalar_select %p28, 0, %s27
    %s30 = ssub.s32 %s17, %s29
    %p31 = scmp.eq.s32.totalorder %s30, 0
    %s33 = sadd.s32 %s32, 1
    %s34 = scalar_select %p31, %s32, %s33
    %p37 = pneg %p31
    %p38 = scmp.eq.s32.totalorder %s10, 1
    %p39 = por %p37, %p38
    %p40 = scmp.ne.s32.totalorder %s32, %s35
    %p41 = scmp.eq.s32.totalorder %s10, 0
    %p42 = por %p40, %p41
    %p43 = scmp.ne.s32.totalorder %s32, %s35
    %p44 = scmp.eq.s32.totalorder %s15, 1
    %p45 = por %p43, %p44
    %p46 = scmp.ne.s32.totalorder %s35, %s36
    %p47 = scmp.eq.s32.totalorder %s15, 0
    %p48 = por %p46, %p47
    %p49 = scmp.ne.s32.totalorder %s35, %s36
    %p50 = scmp.eq.s32.totalorder %s16, 1
    %p51 = por %p49, %p50
    %p53 = scmp.ne.s32.totalorder %s36, %s52
    %p54 = scmp.eq.s32.totalorder %s16, 0
    %p55 = por %p53, %p54
    %s57 = sadd.s32 %s56, 1
    %p60 = scmp.eq.s32.totalorder %s10, 1
    %p61 = scmp.ne.s32.totalorder %s56, %s58
    %p62 = scmp.eq.s32.totalorder %s10, 0
    %p63 = por %p61, %p62
    %p64 = scmp.ne.s32.totalorder %s56, %s58
    %p65 = scmp.eq.s32.totalorder %s15, 1
    %p66 = por %p64, %p65
    %p67 = scmp.ne.s32.totalorder %s58, %s59
    %p68 = scmp.eq.s32.totalorder %s15, 0
    %p69 = por %p67, %p68
    %p70 = scmp.ne.s32.totalorder %s58, %s59
    %p71 = scmp.eq.s32.totalorder %s16, 1
    %p72 = por %p70, %p71
    %p74 = scmp.ne.s32.totalorder %s59, %s73
    %p75 = scmp.eq.s32.totalorder %s16, 0
    %p76 = por %p74, %p75
    %s78 = sadd.s32 %s77, 1
    %p81 = scmp.eq.s32.totalorder %s10, 1
    %p82 = scmp.ne.s32.totalorder %s77, %s79
    %p83 = scmp.eq.s32.totalorder %s10, 0
    %p84 = por %p82, %p83
    %p85 = scmp.ne.s32.totalorder %s77, %s79
    %p86 = scmp.eq.s32.totalorder %s15, 1
    %p87 = por %p85, %p86
    %p88 = scmp.ne.s32.totalorder %s79, %s80
    %p89 = scmp.eq.s32.totalorder %s15, 0
    %p90 = por %p88, %p89
    %p91 = scmp.ne.s32.totalorder %s79, %s80
    %p92 = scmp.eq.s32.totalorder %s16, 1
    %p93 = por %p91, %p92
    %p95 = scmp.ne.s32.totalorder %s80, %s94
    %p96 = scmp.eq.s32.totalorder %s16, 0
    %p97 = por %p95, %p96
    %s98 = ssub.s32 %s17, %s29
    %s99 = ssub.s32 %s18, %s25
    %s100 = sor.u32 %s98, %s99
    %p101 = scmp.eq.s32.totalorder %s100, 0
    %s103 = sadd.s32 %s102, 1
    %s104 = scalar_select %p101, %s102, %s103
    %p107 = pneg %p101
    %p108 = scmp.eq.s32.totalorder %s10, 1
    %p109 = por %p107, %p108
    %p110 = scmp.ne.s32.totalorder %s102, %s105
    %p111 = scmp.eq.s32.totalorder %s10, 0
    %p112 = por %p110, %p111
    %p113 = scmp.ne.s32.totalorder %s102, %s105
    %p114 = scmp.eq.s32.totalorder %s15, 1
    %p115 = por %p113, %p114
    %p116 = scmp.ne.s32.totalorder %s105, %s106
    %p117 = scmp.eq.s32.totalorder %s15, 0
    %p118 = por %p116, %p117
    %p119 = scmp.ne.s32.totalorder %s105, %s106
    %p120 = scmp.eq.s32.totalorder %s16, 1
    %p121 = por %p119, %p120
    %p123 = scmp.ne.s32.totalorder %s106, %s122
    %p124 = scmp.eq.s32.totalorder %s16, 0
    %p125 = por %p123, %p124
    %s126 = ssub.s32 %s17, %s29
    %s127 = ssub.s32 %s18, %s25
    %s128 = sor.u32 %s126, %s127
    %p129 = scmp.eq.s32.totalorder %s128, 0
    %s131 = sadd.s32 %s130, 1
    %s132 = scalar_select %p129, %s130, %s131
    %p135 = pneg %p129
    %p136 = scmp.eq.s32.totalorder %s10, 1
    %p137 = por %p135, %p136
    %p138 = scmp.ne.s32.totalorder %s130, %s133
    %p139 = scmp.eq.s32.totalorder %s10, 0
    %p140 = por %p138, %p139
    %p141 = scmp.ne.s32.totalorder %s130, %s133
    %p142 = scmp.eq.s32.totalorder %s15, 1
    %p143 = por %p141, %p142
    %p144 = scmp.ne.s32.totalorder %s133, %s134
    %p145 = scmp.eq.s32.totalorder %s15, 0
    %p146 = por %p144, %p145
    %p147 = scmp.ne.s32.totalorder %s133, %s134
    %p148 = scmp.eq.s32.totalorder %s16, 1
    %p149 = por %p147, %p148
    %p151 = scmp.ne.s32.totalorder %s134, %s150
    %p152 = scmp.eq.s32.totalorder %s16, 0
    %p153 = por %p151, %p152
    %p154 = scmp.le.s32.totalorder 1, %s10
    %p155 = scmp.lt.s32.totalorder %s10, 3
    %p156 = pnand %p154, %p155
    %p157 = pneg %p156
    // Predicated region
    $region9: #{_lambda_.3} parent=5 // pred_check
      _
    $region10: #{_lambda_.3} parent=5 // pred_check_branch
      %159 = sbr.rel (%p156) target = $region12
    $region11: #{_lambda_.3} parent=5 // pred_region
      %s160 = ssub.s32 %s10, 1
      // Predicated region
      $region13: #{_lambda_.3} parent=11 // pred_check
        %p161 = pneg %p69
      $region14: #{_lambda_.3} parent=11 // pred_check_branch
        %163 = sbr.rel (%p161) target = $region16
      $region15: #{_lambda_.3} parent=11 // pred_region
        _
      $region16: #{_lambda_.3} parent=11 // pred_fallthru
        _
      // Predicated region
      $region17: #{_lambda_.3} parent=11 // pred_check
        %p164 = pneg %p90
      $region18: #{_lambda_.3} parent=11 // pred_check_branch
        %166 = sbr.rel (%p164) target = $region20
      $region19: #{_lambda_.3} parent=11 // pred_region
        _
      $region20: #{_lambda_.3} parent=11 // pred_fallthru
        _
    $region12: #{_lambda_.3} parent=5 // pred_fallthru
      _
    %p167 = scmp.lt.s32.totalorder %s10, 2
    // Predicated region
    $region21: #{_lambda_.3} parent=5 // pred_check
      %p168 = pneg %p167
    $region22: #{_lambda_.3} parent=5 // pred_check_branch
      %170 = sbr.rel (%p168) target = $region24
    $region23: #{_lambda_.3} parent=5 // pred_region
      // Predicated region
      $region25: #{_lambda_.3} parent=23 // pred_check
        %p171 = pneg %p42
      $region26: #{_lambda_.3} parent=23 // pred_check_branch
        %173 = sbr.rel (%p171) target = $region28
      $region27: #{_lambda_.3} parent=23 // pred_region
        %p174 = scmp.lt.s32.totalorder %s17, 1
        %s175 = scalar_select %p174, %s17, 1
        %s176 = smul.addr %s175, 13
        %s177 = smul.addr %s176, 8
        %s178 = scalar_lea.vmem %s0, %s177
      $region28: #{_lambda_.3} parent=23 // pred_fallthru
        _
      // Predicated region
      $region29: #{_lambda_.3} parent=23 // pred_check
        %p179 = pneg %p112
      $region30: #{_lambda_.3} parent=23 // pred_check_branch
        %181 = sbr.rel (%p179) target = $region32
      $region31: #{_lambda_.3} parent=23 // pred_region
        %s182 = smul.u32 10, %s18
        %p183 = scmp.lt.s32.totalorder %s17, 1
        %s184 = scalar_select %p183, %s17, 1
        %p185 = scmp.lt.s32.totalorder %s182, 9
        %s186 = scalar_select %p185, %s182, 9
        %s187 = smul.addr %s184, 10
        %s188 = sadd.s32 %s186, %s187
        %s189 = smul.addr %s188, 8
        %s190 = scalar_lea.vmem %s3, %s189
        %s191 = smul.u32 10, %s18
      $region32: #{_lambda_.3} parent=23 // pred_fallthru
        _
    $region24: #{_lambda_.3} parent=5 // pred_fallthru
      _
    %p192 = scmp.le.s32.totalorder 1, %s10
    %p193 = scmp.lt.s32.totalorder %s10, 3
    %p194 = pnand %p192, %p193
    %p195 = pneg %p194
    // Predicated region
    $region33: #{_lambda_.3} parent=5 // pred_check
      _
    $region34: #{_lambda_.3} parent=5 // pred_check_branch
      %197 = sbr.rel (%p194) target = $region36
    $region35: #{_lambda_.3} parent=5 // pred_region
      %s198 = ssub.s32 %s10, 1
      %p199 = scmp.lt.s32.totalorder %s19, 1
      %s200 = scalar_select %p199, %s19, 1
      %s201 = smul.addr %s200, 13
      %s202 = smul.addr %s201, 8
      %s203 = scalar_lea.vmem %s0, %s202
      %p204 = pneg %p48
      %p205 = pneg %p45
      %p206 = pneg %p69
      %p207 = pneg %p66
      %p208 = pneg %p90
      %p209 = pneg %p87
      %s210 = smul.u32 10, %s20
      %p211 = scmp.lt.s32.totalorder %s19, 1
      %s212 = scalar_select %p211, %s19, 1
      %p213 = scmp.lt.s32.totalorder %s210, 9
      %s214 = scalar_select %p213, %s210, 9
      %s215 = smul.addr %s212, 10
      %s216 = sadd.s32 %s214, %s215
      %s217 = smul.addr %s216, 8
      %s218 = scalar_lea.vmem %s3, %s217
      %p219 = pneg %p118
      %p220 = pneg %p115
      %p221 = pneg %p146
      %p222 = pneg %p143
      %s223 = smul.u32 10, %s20
      %p224 = scmp.lt.s32.totalorder %s19, 1
      %s225 = scalar_select %p224, %s19, 1
      %p226 = scmp.lt.s32.totalorder %s223, 9
      %s227 = scalar_select %p226, %s223, 9
      %s228 = smul.addr %s225, 10
      %s229 = sadd.s32 %s227, %s228
      %s230 = smul.addr %s229, 8
      %s231 = scalar_lea.vmem %s4, %s230
      %p232 = scmp.lt.s32.totalorder %s19, 1
      %s233 = scalar_select %p232, %s19, 1
      %s234 = smul.addr %s233, 13
      %s235 = smul.addr %s234, 8
      %s236 = scalar_lea.vmem %s0, %s235
      %s237 = smul.u32 10, %s20
      %p238 = scmp.lt.s32.totalorder %s19, 1
      %s239 = scalar_select %p238, %s19, 1
      %p240 = scmp.lt.s32.totalorder %s237, 9
      %s241 = scalar_select %p240, %s237, 9
      %s242 = smul.addr %s239, 10
      %s243 = sadd.s32 %s241, %s242
      %s244 = smul.addr %s243, 8
      %s245 = scalar_lea.vmem %s3, %s244
      %s246 = smul.u32 10, %s20
      %s247 = smul.u32 10, %s20
      %p248 = scmp.lt.s32.totalorder %s19, 1
      %s249 = scalar_select %p248, %s19, 1
      %p250 = scmp.lt.s32.totalorder %s247, 9
      %s251 = scalar_select %p250, %s247, 9
      %s252 = smul.addr %s249, 10
      %s253 = sadd.s32 %s251, %s252
      %s254 = smul.addr %s253, 8
      %s255 = scalar_lea.vmem %s4, %s254
      %s256 = smul.u32 10, %s20
      %s258 = smul.u32 %s20, 80
      %s259 = scalar_lea.vmem %s236, %s258
      %v260 = vld [vmem:[%s259] sm:$0xff]
      %v261 = vld [vmem:[%s259 + $0x8] sm:$0xff]
      %v262 = vld [vmem:[%s259 + $0x10] sm:$0xff]
      %v263 = vld [vmem:[%s259 + $0x18] sm:$0xff]
      %v264 = vld [vmem:[%s259 + $0x20] sm:$0xff]
      %v265 = vld [vmem:[%s259 + $0x28] sm:$0xff]
      %v266 = vld [vmem:[%s259 + $0x30] sm:$0xff]
      %v267 = vld [vmem:[%s259 + $0x38] sm:$0xff]
      %v268 = vld [vmem:[%s259 + $0x40] sm:$0xff]
      %v269 = vld [vmem:[%s259 + $0x48] sm:$0xff]
      %v270 = vpack.c.bf16 %v261, %v260
      %v271 = vpack.c.bf16 %v263, %v262
      %v272 = vpack.c.bf16 %v265, %v264
      %v273 = vpack.c.bf16 %v267, %v266
      %v274 = vpack.c.bf16 %v269, %v268
      %v275 = vld [vmem:[%s1] sm:$0xf]
      %s276 = sadd.s32 %s258, 1
      %s277 = scalar_lea.vmem %s236, %s276
      %v278 = vld [vmem:[%s277] sm:$0xff]
      %v279 = vld [vmem:[%s277 + $0x8] sm:$0xff]
      %v280 = vld [vmem:[%s277 + $0x10] sm:$0xff]
      %v281 = vld [vmem:[%s277 + $0x18] sm:$0xff]
      %v282 = vld [vmem:[%s277 + $0x20] sm:$0xff]
      %v283 = vld [vmem:[%s277 + $0x28] sm:$0xff]
      %v284 = vld [vmem:[%s277 + $0x30] sm:$0xff]
      %v285 = vld [vmem:[%s277 + $0x38] sm:$0xff]
      %v286 = vld [vmem:[%s277 + $0x40] sm:$0xff]
      %v287 = vld [vmem:[%s277 + $0x48] sm:$0xff]
      %v288 = vpack.c.bf16 %v279, %v278
      %v289 = vpack.c.bf16 %v281, %v280
      %v290 = vpack.c.bf16 %v283, %v282
      %v291 = vpack.c.bf16 %v285, %v284
      %v292 = vpack.c.bf16 %v287, %v286
      %s293 = scalar_lea.vmem %s1, 4
      %v294 = vld [vmem:[%s293] sm:$0xf]
      %vm295 = vcmask 64512
      %v297 = vsel %vm295, %v288, 0
      %v300 = vsel %vm295, %v289, 0
      %v303 = vsel %vm295, %v290, 0
      %v306 = vsel %vm295, %v291, 0
      %v309 = vsel %vm295, %v292, 0
      %vm311 = vcmask 1043456
      %v313 = vsel %vm311, %v294, 0
      %315 = vmatprep.subr.bf16.mxu0 0
      %316 = vmatpush1.bf16.msra.mxu0 0
      %317 = vmatprep.subr.bf16.mxu0 0
      %318 = vmatpush1.bf16.msra.mxu0 0
      %319 = vmatprep.subr.bf16.mxu0 0
      %320 = vmatpush1.bf16.msra.mxu0 0
      %321 = vmatprep.subr.bf16.mxu0 0
      %322 = vmatpush1.bf16.msra.mxu0 0
      %323 = vmatprep.subr.bf16.mxu0 0
      %324 = vmatpush1.bf16.msra.mxu0 0
      %325 = vmatprep.subr.bf16.mxu0 0
      %326 = vmatpush1.bf16.msra.mxu0 0
      %327 = vmatprep.subr.bf16.mxu0 0
      %328 = vmatpush1.bf16.msra.mxu0 0
      %329 = vmatprep.subr.bf16.mxu0 0
      %330 = vmatpush1.bf16.msra.mxu0 %v313
      %331 = vmatprep.subr.bf16.mxu0 0
      %332 = vmatpush2.bf16.msra.mxu0 0
      %333 = vmatprep.subr.bf16.mxu0 0
      %334 = vmatpush2.bf16.msra.mxu0 0
      %335 = vmatprep.subr.bf16.mxu0 0
      %336 = vmatpush2.bf16.msra.mxu0 0
      %337 = vmatprep.subr.bf16.mxu0 0
      %338 = vmatpush2.bf16.msra.mxu0 0
      %339 = vmatprep.subr.bf16.mxu0 0
      %340 = vmatpush2.bf16.msra.mxu0 0
      %341 = vmatprep.subr.bf16.mxu0 0
      %342 = vmatpush2.bf16.msra.mxu0 0
      %343 = vmatprep.subr.bf16.mxu0 0
      %344 = vmatpush2.bf16.msra.mxu0 0
      %345 = vmatprep.subr.bf16.mxu0 0
      %346 = vmatpush2.bf16.msra.mxu0 0
      %347 = vmatprep.mubr.bf16.mxu0 0
      %348 = vmatmul.mubr.bf16.gmra.mxu0 %v297
      %v349 = vpop.f32.mrf.mxu0
      %v350 = vadd.f32 0.0, %v349
      %v351 = vpop.f32.mrf.mxu0
      %v352 = vpop.f32.mrf.mxu0
      %v353 = vadd.f32 0.0, %v352
      %v354 = vpop.f32.mrf.mxu0
      %355 = vmatprep.mubr.bf16.mxu0 0
      %356 = vmatmul.mubr.bf16.gmra.mxu0 %v300
      %v357 = vpop.f32.mrf.mxu0
      %v358 = vadd.f32 0.0, %v357
      %v359 = vpop.f32.mrf.mxu0
      %v360 = vpop.f32.mrf.mxu0
      %v361 = vadd.f32 0.0, %v360
      %v362 = vpop.f32.mrf.mxu0
      %363 = vmatprep.mubr.bf16.mxu0 0
      %364 = vmatmul.mubr.bf16.gmra.mxu0 %v303
      %v365 = vpop.f32.mrf.mxu0
      %v366 = vadd.f32 0.0, %v365
      %v367 = vpop.f32.mrf.mxu0
      %v368 = vpop.f32.mrf.mxu0
      %v369 = vadd.f32 0.0, %v368
      %v370 = vpop.f32.mrf.mxu0
      %371 = vmatprep.mubr.bf16.mxu0 0
      %372 = vmatmul.mubr.bf16.gmra.mxu0 %v306
      %v373 = vpop.f32.mrf.mxu0
      %v374 = vadd.f32 0.0, %v373
      %v375 = vpop.f32.mrf.mxu0
      %v376 = vpop.f32.mrf.mxu0
      %v377 = vadd.f32 0.0, %v376
      %v378 = vpop.f32.mrf.mxu0
      %379 = vmatprep.mubr.bf16.mxu0 0
      %380 = vmatmul.mubr.bf16.gmra.mxu0 %v309
      %v381 = vpop.f32.mrf.mxu0
      %v382 = vadd.f32 0.0, %v381
      %v383 = vpop.f32.mrf.mxu0
      %v384 = vpop.f32.mrf.mxu0
      %v385 = vadd.f32 0.0, %v384
      %v386 = vpop.f32.mrf.mxu0
      %387 = vdwg.mxu0
      %v389 = vsel %vm295, %v270, 0
      %v392 = vsel %vm295, %v271, 0
      %v395 = vsel %vm295, %v272, 0
      %v398 = vsel %vm295, %v273, 0
      %v401 = vsel %vm295, %v274, 0
      %v404 = vsel %vm311, %v275, 0
      %406 = vmatprep.subr.bf16.mxu0 0
      %407 = vmatpush1.bf16.msra.mxu0 0
      %408 = vmatprep.subr.bf16.mxu0 0
      %409 = vmatpush1.bf16.msra.mxu0 0
      %410 = vmatprep.subr.bf16.mxu0 0
      %411 = vmatpush1.bf16.msra.mxu0 0
      %412 = vmatprep.subr.bf16.mxu0 0
      %413 = vmatpush1.bf16.msra.mxu0 0
      %414 = vmatprep.subr.bf16.mxu0 0
      %415 = vmatpush1.bf16.msra.mxu0 0
      %416 = vmatprep.subr.bf16.mxu0 0
      %417 = vmatpush1.bf16.msra.mxu0 0
      %418 = vmatprep.subr.bf16.mxu0 0
      %419 = vmatpush1.bf16.msra.mxu0 0
      %420 = vmatprep.subr.bf16.mxu0 0
      %421 = vmatpush1.bf16.msra.mxu0 %v404
      %422 = vmatprep.subr.bf16.mxu0 0
      %423 = vmatpush2.bf16.msra.mxu0 0
      %424 = vmatprep.subr.bf16.mxu0 0
      %425 = vmatpush2.bf16.msra.mxu0 0
      %426 = vmatprep.subr.bf16.mxu0 0
      %427 = vmatpush2.bf16.msra.mxu0 0
      %428 = vmatprep.subr.bf16.mxu0 0
      %429 = vmatpush2.bf16.msra.mxu0 0
      %430 = vmatprep.subr.bf16.mxu0 0
      %431 = vmatpush2.bf16.msra.mxu0 0
      %432 = vmatprep.subr.bf16.mxu0 0
      %433 = vmatpush2.bf16.msra.mxu0 0
      %434 = vmatprep.subr.bf16.mxu0 0
      %435 = vmatpush2.bf16.msra.mxu0 0
      %436 = vmatprep.subr.bf16.mxu0 0
      %437 = vmatpush2.bf16.msra.mxu0 0
      %438 = vmatprep.mubr.bf16.mxu0 0
      %439 = vmatmul.mubr.bf16.gmra.mxu0 %v389
      %v440 = vpop.f32.mrf.mxu0
      %v441 = vadd.f32 %v350, %v440
      %v442 = vpop.f32.mrf.mxu0
      %v443 = vpop.f32.mrf.mxu0
      %v444 = vadd.f32 %v353, %v443
      %v445 = vpop.f32.mrf.mxu0
      %446 = vmatprep.mubr.bf16.mxu0 0
      %447 = vmatmul.mubr.bf16.gmra.mxu0 %v392
      %v448 = vpop.f32.mrf.mxu0
      %v449 = vadd.f32 %v358, %v448
      %v450 = vpop.f32.mrf.mxu0
      %v451 = vpop.f32.mrf.mxu0
      %v452 = vadd.f32 %v361, %v451
      %v453 = vpop.f32.mrf.mxu0
      %454 = vmatprep.mubr.bf16.mxu0 0
      %455 = vmatmul.mubr.bf16.gmra.mxu0 %v395
      %v456 = vpop.f32.mrf.mxu0
      %v457 = vadd.f32 %v366, %v456
      %v458 = vpop.f32.mrf.mxu0
      %v459 = vpop.f32.mrf.mxu0
      %v460 = vadd.f32 %v369, %v459
      %v461 = vpop.f32.mrf.mxu0
      %462 = vmatprep.mubr.bf16.mxu0 0
      %463 = vmatmul.mubr.bf16.gmra.mxu0 %v398
      %v464 = vpop.f32.mrf.mxu0
      %v465 = vadd.f32 %v374, %v464
      %v466 = vpop.f32.mrf.mxu0
      %v467 = vpop.f32.mrf.mxu0
      %v468 = vadd.f32 %v377, %v467
      %v469 = vpop.f32.mrf.mxu0
      %470 = vmatprep.mubr.bf16.mxu0 0
      %471 = vmatmul.mubr.bf16.gmra.mxu0 %v401
      %v472 = vpop.f32.mrf.mxu0
      %v473 = vadd.f32 %v382, %v472
      %v474 = vpop.f32.mrf.mxu0
      %v475 = vpop.f32.mrf.mxu0
      %v476 = vadd.f32 %v385, %v475
      %v477 = vpop.f32.mrf.mxu0
      %478 = vdwg.mxu0
      %s479 = sadd.s32 %s258, 2
      %s480 = scalar_lea.vmem %s236, %s479
      %v481 = vld [vmem:[%s480] sm:$0xff]
      %v482 = vld [vmem:[%s480 + $0x8] sm:$0xff]
      %v483 = vld [vmem:[%s480 + $0x10] sm:$0xff]
      %v484 = vld [vmem:[%s480 + $0x18] sm:$0xff]
      %v485 = vld [vmem:[%s480 + $0x20] sm:$0xff]
      %v486 = vld [vmem:[%s480 + $0x28] sm:$0xff]
      %v487 = vld [vmem:[%s480 + $0x30] sm:$0xff]
      %v488 = vld [vmem:[%s480 + $0x38] sm:$0xff]
      %v489 = vld [vmem:[%s480 + $0x40] sm:$0xff]
      %v490 = vld [vmem:[%s480 + $0x48] sm:$0xff]
      %v491 = vpack.c.bf16 %v482, %v481
      %v492 = vpack.c.bf16 %v484, %v483
      %v493 = vpack.c.bf16 %v486, %v485
      %v494 = vpack.c.bf16 %v488, %v487
      %v495 = vpack.c.bf16 %v490, %v489
      %s496 = scalar_lea.vmem %s1, 8
      %v497 = vld [vmem:[%s496] sm:$0xf]
      %v499 = vsel %vm295, %v491, 0
      %v502 = vsel %vm295, %v492, 0
      %v505 = vsel %vm295, %v493, 0
      %v508 = vsel %vm295, %v494, 0
      %v511 = vsel %vm295, %v495, 0
      %v514 = vsel %vm311, %v497, 0
      %516 = vmatprep.subr.bf16.mxu0 0
      %517 = vmatpush1.bf16.msra.mxu0 0
      %518 = vmatprep.subr.bf16.mxu0 0
      %519 = vmatpush1.bf16.msra.mxu0 0
      %520 = vmatprep.subr.bf16.mxu0 0
      %521 = vmatpush1.bf16.msra.mxu0 0
      %522 = vmatprep.subr.bf16.mxu0 0
      %523 = vmatpush1.bf16.msra.mxu0 0
      %524 = vmatprep.subr.bf16.mxu0 0
      %525 = vmatpush1.bf16.msra.mxu0 0
      %526 = vmatprep.subr.bf16.mxu0 0
      %527 = vmatpush1.bf16.msra.mxu0 0
      %528 = vmatprep.subr.bf16.mxu0 0
      %529 = vmatpush1.bf16.msra.mxu0 0
      %530 = vmatprep.subr.bf16.mxu0 0
      %531 = vmatpush1.bf16.msra.mxu0 %v514
      %532 = vmatprep.subr.bf16.mxu0 0
      %533 = vmatpush2.bf16.msra.mxu0 0
      %534 = vmatprep.subr.bf16.mxu0 0
      %535 = vmatpush2.bf16.msra.mxu0 0
      %536 = vmatprep.subr.bf16.mxu0 0
      %537 = vmatpush2.bf16.msra.mxu0 0
      %538 = vmatprep.subr.bf16.mxu0 0
      %539 = vmatpush2.bf16.msra.mxu0 0
      %540 = vmatprep.subr.bf16.mxu0 0
      %541 = vmatpush2.bf16.msra.mxu0 0
      %542 = vmatprep.subr.bf16.mxu0 0
      %543 = vmatpush2.bf16.msra.mxu0 0
      %544 = vmatprep.subr.bf16.mxu0 0
      %545 = vmatpush2.bf16.msra.mxu0 0
      %546 = vmatprep.subr.bf16.mxu0 0
      %547 = vmatpush2.bf16.msra.mxu0 0
      %548 = vmatprep.mubr.bf16.mxu0 0
      %549 = vmatmul.mubr.bf16.gmra.mxu0 %v499
      %v550 = vpop.f32.mrf.mxu0
      %v551 = vadd.f32 0.0, %v550
      %v552 = vpop.f32.mrf.mxu0
      %v553 = vpop.f32.mrf.mxu0
      %v554 = vadd.f32 0.0, %v553
      %v555 = vpop.f32.mrf.mxu0
      %556 = vmatprep.mubr.bf16.mxu0 0
      %557 = vmatmul.mubr.bf16.gmra.mxu0 %v502
      %v558 = vpop.f32.mrf.mxu0
      %v559 = vadd.f32 0.0, %v558
      %v560 = vpop.f32.mrf.mxu0
      %v561 = vpop.f32.mrf.mxu0
      %v562 = vadd.f32 0.0, %v561
      %v563 = vpop.f32.mrf.mxu0
      %564 = vmatprep.mubr.bf16.mxu0 0
      %565 = vmatmul.mubr.bf16.gmra.mxu0 %v505
      %v566 = vpop.f32.mrf.mxu0
      %v567 = vadd.f32 0.0, %v566
      %v568 = vpop.f32.mrf.mxu0
      %v569 = vpop.f32.mrf.mxu0
      %v570 = vadd.f32 0.0, %v569
      %v571 = vpop.f32.mrf.mxu0
      %572 = vmatprep.mubr.bf16.mxu0 0
      %573 = vmatmul.mubr.bf16.gmra.mxu0 %v508
      %v574 = vpop.f32.mrf.mxu0
      %v575 = vadd.f32 0.0, %v574
      %v576 = vpop.f32.mrf.mxu0
      %v577 = vpop.f32.mrf.mxu0
      %v578 = vadd.f32 0.0, %v577
      %v579 = vpop.f32.mrf.mxu0
      %580 = vmatprep.mubr.bf16.mxu0 0
      %581 = vmatmul.mubr.bf16.gmra.mxu0 %v511
      %v582 = vpop.f32.mrf.mxu0
      %v583 = vadd.f32 0.0, %v582
      %v584 = vpop.f32.mrf.mxu0
      %v585 = vpop.f32.mrf.mxu0
      %v586 = vadd.f32 0.0, %v585
      %v587 = vpop.f32.mrf.mxu0
      %588 = vdwg.mxu0
      %v589 = vadd.f32 %v441, %v551
      %v590 = vadd.f32 %v444, %v554
      %v591 = vadd.f32 %v449, %v559
      %v592 = vadd.f32 %v452, %v562
      %v593 = vadd.f32 %v457, %v567
      %v594 = vadd.f32 %v460, %v570
      %v595 = vadd.f32 %v465, %v575
      %v596 = vadd.f32 %v468, %v578
      %v597 = vadd.f32 %v473, %v583
      %v598 = vadd.f32 %v476, %v586
      %s599 = sadd.s32 %s258, 10
      %s600 = scalar_lea.vmem %s236, %s599
      %v601 = vld [vmem:[%s600] sm:$0xff]
      %v602 = vld [vmem:[%s600 + $0x8] sm:$0xff]
      %v603 = vld [vmem:[%s600 + $0x10] sm:$0xff]
      %v604 = vld [vmem:[%s600 + $0x18] sm:$0xff]
      %v605 = vld [vmem:[%s600 + $0x20] sm:$0xff]
      %v606 = vld [vmem:[%s600 + $0x28] sm:$0xff]
      %v607 = vld [vmem:[%s600 + $0x30] sm:$0xff]
      %v608 = vld [vmem:[%s600 + $0x38] sm:$0xff]
      %v609 = vld [vmem:[%s600 + $0x40] sm:$0xff]
      %v610 = vld [vmem:[%s600 + $0x48] sm:$0xff]
      %v611 = vpack.c.bf16 %v602, %v601
      %v612 = vpack.c.bf16 %v604, %v603
      %v613 = vpack.c.bf16 %v606, %v605
      %v614 = vpack.c.bf16 %v608, %v607
      %v615 = vpack.c.bf16 %v610, %v609
      %s616 = scalar_lea.vmem %s1, 12
      %v617 = vld [vmem:[%s616] sm:$0xf]
      %v619 = vsel %vm295, %v611, 0
      %v622 = vsel %vm295, %v612, 0
      %v625 = vsel %vm295, %v613, 0
      %v628 = vsel %vm295, %v614, 0
      %v631 = vsel %vm295, %v615, 0
      %v634 = vsel %vm311, %v617, 0
      %636 = vmatprep.subr.bf16.mxu0 0
      %637 = vmatpush1.bf16.msra.mxu0 0
      %638 = vmatprep.subr.bf16.mxu0 0
      %639 = vmatpush1.bf16.msra.mxu0 0
      %640 = vmatprep.subr.bf16.mxu0 0
      %641 = vmatpush1.bf16.msra.mxu0 0
      %642 = vmatprep.subr.bf16.mxu0 0
      %643 = vmatpush1.bf16.msra.mxu0 0
      %644 = vmatprep.subr.bf16.mxu0 0
      %645 = vmatpush1.bf16.msra.mxu0 0
      %646 = vmatprep.subr.bf16.mxu0 0
      %647 = vmatpush1.bf16.msra.mxu0 0
      %648 = vmatprep.subr.bf16.mxu0 0
      %649 = vmatpush1.bf16.msra.mxu0 0
      %650 = vmatprep.subr.bf16.mxu0 0
      %651 = vmatpush1.bf16.msra.mxu0 %v634
      %652 = vmatprep.subr.bf16.mxu0 0
      %653 = vmatpush2.bf16.msra.mxu0 0
      %654 = vmatprep.subr.bf16.mxu0 0
      %655 = vmatpush2.bf16.msra.mxu0 0
      %656 = vmatprep.subr.bf16.mxu0 0
      %657 = vmatpush2.bf16.msra.mxu0 0
      %658 = vmatprep.subr.bf16.mxu0 0
      %659 = vmatpush2.bf16.msra.mxu0 0
      %660 = vmatprep.subr.bf16.mxu0 0
      %661 = vmatpush2.bf16.msra.mxu0 0
      %662 = vmatprep.subr.bf16.mxu0 0
      %663 = vmatpush2.bf16.msra.mxu0 0
      %664 = vmatprep.subr.bf16.mxu0 0
      %665 = vmatpush2.bf16.msra.mxu0 0
      %666 = vmatprep.subr.bf16.mxu0 0
      %667 = vmatpush2.bf16.msra.mxu0 0
      %668 = vmatprep.mubr.bf16.mxu0 0
      %669 = vmatmul.mubr.bf16.gmra.mxu0 %v619
      %v670 = vpop.f32.mrf.mxu0
      %v671 = vadd.f32 0.0, %v670
      %v672 = vpop.f32.mrf.mxu0
      %v673 = vpop.f32.mrf.mxu0
      %v674 = vadd.f32 0.0, %v673
      %v675 = vpop.f32.mrf.mxu0
      %676 = vmatprep.mubr.bf16.mxu0 0
      %677 = vmatmul.mubr.bf16.gmra.mxu0 %v622
      %v678 = vpop.f32.mrf.mxu0
      %v679 = vadd.f32 0.0, %v678
      %v680 = vpop.f32.mrf.mxu0
      %v681 = vpop.f32.mrf.mxu0
      %v682 = vadd.f32 0.0, %v681
      %v683 = vpop.f32.mrf.mxu0
      %684 = vmatprep.mubr.bf16.mxu0 0
      %685 = vmatmul.mubr.bf16.gmra.mxu0 %v625
      %v686 = vpop.f32.mrf.mxu0
      %v687 = vadd.f32 0.0, %v686
      %v688 = vpop.f32.mrf.mxu0
      %v689 = vpop.f32.mrf.mxu0
      %v690 = vadd.f32 0.0, %v689
      %v691 = vpop.f32.mrf.mxu0
      %692 = vmatprep.mubr.bf16.mxu0 0
      %693 = vmatmul.mubr.bf16.gmra.mxu0 %v628
      %v694 = vpop.f32.mrf.mxu0
      %v695 = vadd.f32 0.0, %v694
      %v696 = vpop.f32.mrf.mxu0
      %v697 = vpop.f32.mrf.mxu0
      %v698 = vadd.f32 0.0, %v697
      %v699 = vpop.f32.mrf.mxu0
      %700 = vmatprep.mubr.bf16.mxu0 0
      %701 = vmatmul.mubr.bf16.gmra.mxu0 %v631
      %v702 = vpop.f32.mrf.mxu0
      %v703 = vadd.f32 0.0, %v702
      %v704 = vpop.f32.mrf.mxu0
      %v705 = vpop.f32.mrf.mxu0
      %v706 = vadd.f32 0.0, %v705
      %v707 = vpop.f32.mrf.mxu0
      %708 = vdwg.mxu0
      %v709 = vadd.f32 %v589, %v671
      %v710 = vadd.f32 %v590, %v674
      %v711 = vadd.f32 %v591, %v679
      %v712 = vadd.f32 %v592, %v682
      %v713 = vadd.f32 %v593, %v687
      %v714 = vadd.f32 %v594, %v690
      %v715 = vadd.f32 %v595, %v695
      %v716 = vadd.f32 %v596, %v698
      %v717 = vadd.f32 %v597, %v703
      %v718 = vadd.f32 %v598, %v706
      %s719 = sadd.s32 %s258, 11
      %s720 = scalar_lea.vmem %s236, %s719
      %v721 = vld [vmem:[%s720] sm:$0xff]
      %v722 = vld [vmem:[%s720 + $0x8] sm:$0xff]
      %v723 = vld [vmem:[%s720 + $0x10] sm:$0xff]
      %v724 = vld [vmem:[%s720 + $0x18] sm:$0xff]
      %v725 = vld [vmem:[%s720 + $0x20] sm:$0xff]
      %v726 = vld [vmem:[%s720 + $0x28] sm:$0xff]
      %v727 = vld [vmem:[%s720 + $0x30] sm:$0xff]
      %v728 = vld [vmem:[%s720 + $0x38] sm:$0xff]
      %v729 = vld [vmem:[%s720 + $0x40] sm:$0xff]
      %v730 = vld [vmem:[%s720 + $0x48] sm:$0xff]
      %v731 = vpack.c.bf16 %v722, %v721
      %v732 = vpack.c.bf16 %v724, %v723
      %v733 = vpack.c.bf16 %v726, %v725
      %v734 = vpack.c.bf16 %v728, %v727
      %v735 = vpack.c.bf16 %v730, %v729
      %s736 = scalar_lea.vmem %s1, 16
      %v737 = vld [vmem:[%s736] sm:$0xf]
      %v739 = vsel %vm295, %v731, 0
      %v742 = vsel %vm295, %v732, 0
      %v745 = vsel %vm295, %v733, 0
      %v748 = vsel %vm295, %v734, 0
      %v751 = vsel %vm295, %v735, 0
      %v754 = vsel %vm311, %v737, 0
      %756 = vmatprep.subr.bf16.mxu0 0
      %757 = vmatpush1.bf16.msra.mxu0 0
      %758 = vmatprep.subr.bf16.mxu0 0
      %759 = vmatpush1.bf16.msra.mxu0 0
      %760 = vmatprep.subr.bf16.mxu0 0
      %761 = vmatpush1.bf16.msra.mxu0 0
      %762 = vmatprep.subr.bf16.mxu0 0
      %763 = vmatpush1.bf16.msra.mxu0 0
      %764 = vmatprep.subr.bf16.mxu0 0
      %765 = vmatpush1.bf16.msra.mxu0 0
      %766 = vmatprep.subr.bf16.mxu0 0
      %767 = vmatpush1.bf16.msra.mxu0 0
      %768 = vmatprep.subr.bf16.mxu0 0
      %769 = vmatpush1.bf16.msra.mxu0 0
      %770 = vmatprep.subr.bf16.mxu0 0
      %771 = vmatpush1.bf16.msra.mxu0 %v754
      %772 = vmatprep.subr.bf16.mxu0 0
      %773 = vmatpush2.bf16.msra.mxu0 0
      %774 = vmatprep.subr.bf16.mxu0 0
      %775 = vmatpush2.bf16.msra.mxu0 0
      %776 = vmatprep.subr.bf16.mxu0 0
      %777 = vmatpush2.bf16.msra.mxu0 0
      %778 = vmatprep.subr.bf16.mxu0 0
      %779 = vmatpush2.bf16.msra.mxu0 0
      %780 = vmatprep.subr.bf16.mxu0 0
      %781 = vmatpush2.bf16.msra.mxu0 0
      %782 = vmatprep.subr.bf16.mxu0 0
      %783 = vmatpush2.bf16.msra.mxu0 0
      %784 = vmatprep.subr.bf16.mxu0 0
      %785 = vmatpush2.bf16.msra.mxu0 0
      %786 = vmatprep.subr.bf16.mxu0 0
      %787 = vmatpush2.bf16.msra.mxu0 0
      %788 = vmatprep.mubr.bf16.mxu0 0
      %789 = vmatmul.mubr.bf16.gmra.mxu0 %v739
      %v790 = vpop.f32.mrf.mxu0
      %v791 = vadd.f32 0.0, %v790
      %v792 = vpop.f32.mrf.mxu0
      %v793 = vpop.f32.mrf.mxu0
      %v794 = vadd.f32 0.0, %v793
      %v795 = vpop.f32.mrf.mxu0
      %796 = vmatprep.mubr.bf16.mxu0 0
      %797 = vmatmul.mubr.bf16.gmra.mxu0 %v742
      %v798 = vpop.f32.mrf.mxu0
      %v799 = vadd.f32 0.0, %v798
      %v800 = vpop.f32.mrf.mxu0
      %v801 = vpop.f32.mrf.mxu0
      %v802 = vadd.f32 0.0, %v801
      %v803 = vpop.f32.mrf.mxu0
      %804 = vmatprep.mubr.bf16.mxu0 0
      %805 = vmatmul.mubr.bf16.gmra.mxu0 %v745
      %v806 = vpop.f32.mrf.mxu0
      %v807 = vadd.f32 0.0, %v806
      %v808 = vpop.f32.mrf.mxu0
      %v809 = vpop.f32.mrf.mxu0
      %v810 = vadd.f32 0.0, %v809
      %v811 = vpop.f32.mrf.mxu0
      %812 = vmatprep.mubr.bf16.mxu0 0
      %813 = vmatmul.mubr.bf16.gmra.mxu0 %v748
      %v814 = vpop.f32.mrf.mxu0
      %v815 = vadd.f32 0.0, %v814
      %v816 = vpop.f32.mrf.mxu0
      %v817 = vpop.f32.mrf.mxu0
      %v818 = vadd.f32 0.0, %v817
      %v819 = vpop.f32.mrf.mxu0
      %820 = vmatprep.mubr.bf16.mxu0 0
      %821 = vmatmul.mubr.bf16.gmra.mxu0 %v751
      %v822 = vpop.f32.mrf.mxu0
      %v823 = vadd.f32 0.0, %v822
      %v824 = vpop.f32.mrf.mxu0
      %v825 = vpop.f32.mrf.mxu0
      %v826 = vadd.f32 0.0, %v825
      %v827 = vpop.f32.mrf.mxu0
      %828 = vdwg.mxu0
      %v829 = vadd.f32 %v709, %v791
      %v830 = vadd.f32 %v710, %v794
      %v831 = vadd.f32 %v711, %v799
      %v832 = vadd.f32 %v712, %v802
      %v833 = vadd.f32 %v713, %v807
      %v834 = vadd.f32 %v714, %v810
      %v835 = vadd.f32 %v715, %v815
      %v836 = vadd.f32 %v716, %v818
      %v837 = vadd.f32 %v717, %v823
      %v838 = vadd.f32 %v718, %v826
      %s839 = sadd.s32 %s258, 12
      %s840 = scalar_lea.vmem %s236, %s839
      %v841 = vld [vmem:[%s840] sm:$0xff]
      %v842 = vld [vmem:[%s840 + $0x8] sm:$0xff]
      %v843 = vld [vmem:[%s840 + $0x10] sm:$0xff]
      %v844 = vld [vmem:[%s840 + $0x18] sm:$0xff]
      %v845 = vld [vmem:[%s840 + $0x20] sm:$0xff]
      %v846 = vld [vmem:[%s840 + $0x28] sm:$0xff]
      %v847 = vld [vmem:[%s840 + $0x30] sm:$0xff]
      %v848 = vld [vmem:[%s840 + $0x38] sm:$0xff]
      %v849 = vld [vmem:[%s840 + $0x40] sm:$0xff]
      %v850 = vld [vmem:[%s840 + $0x48] sm:$0xff]
      %v851 = vpack.c.bf16 %v842, %v841
      %v852 = vpack.c.bf16 %v844, %v843
      %v853 = vpack.c.bf16 %v846, %v845
      %v854 = vpack.c.bf16 %v848, %v847
      %v855 = vpack.c.bf16 %v850, %v849
      %s856 = scalar_lea.vmem %s1, 20
      %v857 = vld [vmem:[%s856] sm:$0xf]
      %v859 = vsel %vm295, %v851, 0
      %v862 = vsel %vm295, %v852, 0
      %v865 = vsel %vm295, %v853, 0
      %v868 = vsel %vm295, %v854, 0
      %v871 = vsel %vm295, %v855, 0
      %v874 = vsel %vm311, %v857, 0
      %876 = vmatprep.subr.bf16.mxu0 0
      %877 = vmatpush1.bf16.msra.mxu0 0
      %878 = vmatprep.subr.bf16.mxu0 0
      %879 = vmatpush1.bf16.msra.mxu0 0
      %880 = vmatprep.subr.bf16.mxu0 0
      %881 = vmatpush1.bf16.msra.mxu0 0
      %882 = vmatprep.subr.bf16.mxu0 0
      %883 = vmatpush1.bf16.msra.mxu0 0
      %884 = vmatprep.subr.bf16.mxu0 0
      %885 = vmatpush1.bf16.msra.mxu0 0
      %886 = vmatprep.subr.bf16.mxu0 0
      %887 = vmatpush1.bf16.msra.mxu0 0
      %888 = vmatprep.subr.bf16.mxu0 0
      %889 = vmatpush1.bf16.msra.mxu0 0
      %890 = vmatprep.subr.bf16.mxu0 0
      %891 = vmatpush1.bf16.msra.mxu0 %v874
      %892 = vmatprep.subr.bf16.mxu0 0
      %893 = vmatpush2.bf16.msra.mxu0 0
      %894 = vmatprep.subr.bf16.mxu0 0
      %895 = vmatpush2.bf16.msra.mxu0 0
      %896 = vmatprep.subr.bf16.mxu0 0
      %897 = vmatpush2.bf16.msra.mxu0 0
      %898 = vmatprep.subr.bf16.mxu0 0
      %899 = vmatpush2.bf16.msra.mxu0 0
      %900 = vmatprep.subr.bf16.mxu0 0
      %901 = vmatpush2.bf16.msra.mxu0 0
      %902 = vmatprep.subr.bf16.mxu0 0
      %903 = vmatpush2.bf16.msra.mxu0 0
      %904 = vmatprep.subr.bf16.mxu0 0
      %905 = vmatpush2.bf16.msra.mxu0 0
      %906 = vmatprep.subr.bf16.mxu0 0
      %907 = vmatpush2.bf16.msra.mxu0 0
      %908 = vmatprep.mubr.bf16.mxu0 0
      %909 = vmatmul.mubr.bf16.gmra.mxu0 %v859
      %v910 = vpop.f32.mrf.mxu0
      %v911 = vadd.f32 0.0, %v910
      %v912 = vpop.f32.mrf.mxu0
      %v913 = vpop.f32.mrf.mxu0
      %v914 = vadd.f32 0.0, %v913
      %v915 = vpop.f32.mrf.mxu0
      %916 = vmatprep.mubr.bf16.mxu0 0
      %917 = vmatmul.mubr.bf16.gmra.mxu0 %v862
      %v918 = vpop.f32.mrf.mxu0
      %v919 = vadd.f32 0.0, %v918
      %v920 = vpop.f32.mrf.mxu0
      %v921 = vpop.f32.mrf.mxu0
      %v922 = vadd.f32 0.0, %v921
      %v923 = vpop.f32.mrf.mxu0
      %924 = vmatprep.mubr.bf16.mxu0 0
      %925 = vmatmul.mubr.bf16.gmra.mxu0 %v865
      %v926 = vpop.f32.mrf.mxu0
      %v927 = vadd.f32 0.0, %v926
      %v928 = vpop.f32.mrf.mxu0
      %v929 = vpop.f32.mrf.mxu0
      %v930 = vadd.f32 0.0, %v929
      %v931 = vpop.f32.mrf.mxu0
      %932 = vmatprep.mubr.bf16.mxu0 0
      %933 = vmatmul.mubr.bf16.gmra.mxu0 %v868
      %v934 = vpop.f32.mrf.mxu0
      %v935 = vadd.f32 0.0, %v934
      %v936 = vpop.f32.mrf.mxu0
      %v937 = vpop.f32.mrf.mxu0
      %v938 = vadd.f32 0.0, %v937
      %v939 = vpop.f32.mrf.mxu0
      %940 = vmatprep.mubr.bf16.mxu0 0
      %941 = vmatmul.mubr.bf16.gmra.mxu0 %v871
      %v942 = vpop.f32.mrf.mxu0
      %v943 = vadd.f32 0.0, %v942
      %v944 = vpop.f32.mrf.mxu0
      %v945 = vpop.f32.mrf.mxu0
      %v946 = vadd.f32 0.0, %v945
      %v947 = vpop.f32.mrf.mxu0
      %948 = vdwg.mxu0
      %v949 = vadd.f32 %v829, %v911
      %v950 = vadd.f32 %v830, %v914
      %v951 = vadd.f32 %v831, %v919
      %v952 = vadd.f32 %v832, %v922
      %v953 = vadd.f32 %v833, %v927
      %v954 = vadd.f32 %v834, %v930
      %v955 = vadd.f32 %v835, %v935
      %v956 = vadd.f32 %v836, %v938
      %v957 = vadd.f32 %v837, %v943
      %v958 = vadd.f32 %v838, %v946
      %s959 = sadd.s32 %s258, 20
      %s960 = scalar_lea.vmem %s236, %s959
      %v961 = vld [vmem:[%s960] sm:$0xff]
      %v962 = vld [vmem:[%s960 + $0x8] sm:$0xff]
      %v963 = vld [vmem:[%s960 + $0x10] sm:$0xff]
      %v964 = vld [vmem:[%s960 + $0x18] sm:$0xff]
      %v965 = vld [vmem:[%s960 + $0x20] sm:$0xff]
      %v966 = vld [vmem:[%s960 + $0x28] sm:$0xff]
      %v967 = vld [vmem:[%s960 + $0x30] sm:$0xff]
      %v968 = vld [vmem:[%s960 + $0x38] sm:$0xff]
      %v969 = vld [vmem:[%s960 + $0x40] sm:$0xff]
      %v970 = vld [vmem:[%s960 + $0x48] sm:$0xff]
      %v971 = vpack.c.bf16 %v962, %v961
      %v972 = vpack.c.bf16 %v964, %v963
      %v973 = vpack.c.bf16 %v966, %v965
      %v974 = vpack.c.bf16 %v968, %v967
      %v975 = vpack.c.bf16 %v970, %v969
      %s976 = scalar_lea.vmem %s1, 24
      %v977 = vld [vmem:[%s976] sm:$0xf]
      %v979 = vsel %vm295, %v971, 0
      %v982 = vsel %vm295, %v972, 0
      %v985 = vsel %vm295, %v973, 0
      %v988 = vsel %vm295, %v974, 0
      %v991 = vsel %vm295, %v975, 0
      %v994 = vsel %vm311, %v977, 0
      %996 = vmatprep.subr.bf16.mxu0 0
      %997 = vmatpush1.bf16.msra.mxu0 0
      %998 = vmatprep.subr.bf16.mxu0 0
      %999 = vmatpush1.bf16.msra.mxu0 0
      %1000 = vmatprep.subr.bf16.mxu0 0
      %1001 = vmatpush1.bf16.msra.mxu0 0
      %1002 = vmatprep.subr.bf16.mxu0 0
      %1003 = vmatpush1.bf16.msra.mxu0 0
      %1004 = vmatprep.subr.bf16.mxu0 0
      %1005 = vmatpush1.bf16.msra.mxu0 0
      %1006 = vmatprep.subr.bf16.mxu0 0
      %1007 = vmatpush1.bf16.msra.mxu0 0
      %1008 = vmatprep.subr.bf16.mxu0 0
      %1009 = vmatpush1.bf16.msra.mxu0 0
      %1010 = vmatprep.subr.bf16.mxu0 0
      %1011 = vmatpush1.bf16.msra.mxu0 %v994
      %1012 = vmatprep.subr.bf16.mxu0 0
      %1013 = vmatpush2.bf16.msra.mxu0 0
      %1014 = vmatprep.subr.bf16.mxu0 0
      %1015 = vmatpush2.bf16.msra.mxu0 0
      %1016 = vmatprep.subr.bf16.mxu0 0
      %1017 = vmatpush2.bf16.msra.mxu0 0
      %1018 = vmatprep.subr.bf16.mxu0 0
      %1019 = vmatpush2.bf16.msra.mxu0 0
      %1020 = vmatprep.subr.bf16.mxu0 0
      %1021 = vmatpush2.bf16.msra.mxu0 0
      %1022 = vmatprep.subr.bf16.mxu0 0
      %1023 = vmatpush2.bf16.msra.mxu0 0
      %1024 = vmatprep.subr.bf16.mxu0 0
      %1025 = vmatpush2.bf16.msra.mxu0 0
      %1026 = vmatprep.subr.bf16.mxu0 0
      %1027 = vmatpush2.bf16.msra.mxu0 0
      %1028 = vmatprep.mubr.bf16.mxu0 0
      %1029 = vmatmul.mubr.bf16.gmra.mxu0 %v979
      %v1030 = vpop.f32.mrf.mxu0
      %v1031 = vadd.f32 0.0, %v1030
      %v1032 = vpop.f32.mrf.mxu0
      %v1033 = vpop.f32.mrf.mxu0
      %v1034 = vadd.f32 0.0, %v1033
      %v1035 = vpop.f32.mrf.mxu0
      %1036 = vmatprep.mubr.bf16.mxu0 0
      %1037 = vmatmul.mubr.bf16.gmra.mxu0 %v982
      %v1038 = vpop.f32.mrf.mxu0
      %v1039 = vadd.f32 0.0, %v1038
      %v1040 = vpop.f32.mrf.mxu0
      %v1041 = vpop.f32.mrf.mxu0
      %v1042 = vadd.f32 0.0, %v1041
      %v1043 = vpop.f32.mrf.mxu0
      %1044 = vmatprep.mubr.bf16.mxu0 0
      %1045 = vmatmul.mubr.bf16.gmra.mxu0 %v985
      %v1046 = vpop.f32.mrf.mxu0
      %v1047 = vadd.f32 0.0, %v1046
      %v1048 = vpop.f32.mrf.mxu0
      %v1049 = vpop.f32.mrf.mxu0
      %v1050 = vadd.f32 0.0, %v1049
      %v1051 = vpop.f32.mrf.mxu0
      %1052 = vmatprep.mubr.bf16.mxu0 0
      %1053 = vmatmul.mubr.bf16.gmra.mxu0 %v988
      %v1054 = vpop.f32.mrf.mxu0
      %v1055 = vadd.f32 0.0, %v1054
      %v1056 = vpop.f32.mrf.mxu0
      %v1057 = vpop.f32.mrf.mxu0
      %v1058 = vadd.f32 0.0, %v1057
      %v1059 = vpop.f32.mrf.mxu0
      %1060 = vmatprep.mubr.bf16.mxu0 0
      %1061 = vmatmul.mubr.bf16.gmra.mxu0 %v991
      %v1062 = vpop.f32.mrf.mxu0
      %v1063 = vadd.f32 0.0, %v1062
      %v1064 = vpop.f32.mrf.mxu0
      %v1065 = vpop.f32.mrf.mxu0
      %v1066 = vadd.f32 0.0, %v1065
      %v1067 = vpop.f32.mrf.mxu0
      %1068 = vdwg.mxu0
      %v1069 = vadd.f32 %v949, %v1031
      %v1070 = vadd.f32 %v950, %v1034
      %v1071 = vadd.f32 %v951, %v1039
      %v1072 = vadd.f32 %v952, %v1042
      %v1073 = vadd.f32 %v953, %v1047
      %v1074 = vadd.f32 %v954, %v1050
      %v1075 = vadd.f32 %v955, %v1055
      %v1076 = vadd.f32 %v956, %v1058
      %v1077 = vadd.f32 %v957, %v1063
      %v1078 = vadd.f32 %v958, %v1066
      %s1079 = sadd.s32 %s258, 21
      %s1080 = scalar_lea.vmem %s236, %s1079
      %v1081 = vld [vmem:[%s1080] sm:$0xff]
      %v1082 = vld [vmem:[%s1080 + $0x8] sm:$0xff]
      %v1083 = vld [vmem:[%s1080 + $0x10] sm:$0xff]
      %v1084 = vld [vmem:[%s1080 + $0x18] sm:$0xff]
      %v1085 = vld [vmem:[%s1080 + $0x20] sm:$0xff]
      %v1086 = vld [vmem:[%s1080 + $0x28] sm:$0xff]
      %v1087 = vld [vmem:[%s1080 + $0x30] sm:$0xff]
      %v1088 = vld [vmem:[%s1080 + $0x38] sm:$0xff]
      %v1089 = vld [vmem:[%s1080 + $0x40] sm:$0xff]
      %v1090 = vld [vmem:[%s1080 + $0x48] sm:$0xff]
      %v1091 = vpack.c.bf16 %v1082, %v1081
      %v1092 = vpack.c.bf16 %v1084, %v1083
      %v1093 = vpack.c.bf16 %v1086, %v1085
      %v1094 = vpack.c.bf16 %v1088, %v1087
      %v1095 = vpack.c.bf16 %v1090, %v1089
      %s1096 = scalar_lea.vmem %s1, 28
      %v1097 = vld [vmem:[%s1096] sm:$0xf]
      %v1099 = vsel %vm295, %v1091, 0
      %v1102 = vsel %vm295, %v1092, 0
      %v1105 = vsel %vm295, %v1093, 0
      %v1108 = vsel %vm295, %v1094, 0
      %v1111 = vsel %vm295, %v1095, 0
      %v1114 = vsel %vm311, %v1097, 0
      %1116 = vmatprep.subr.bf16.mxu0 0
      %1117 = vmatpush1.bf16.msra.mxu0 0
      %1118 = vmatprep.subr.bf16.mxu0 0
      %1119 = vmatpush1.bf16.msra.mxu0 0
      %1120 = vmatprep.subr.bf16.mxu0 0
      %1121 = vmatpush1.bf16.msra.mxu0 0
      %1122 = vmatprep.subr.bf16.mxu0 0
      %1123 = vmatpush1.bf16.msra.mxu0 0
      %1124 = vmatprep.subr.bf16.mxu0 0
      %1125 = vmatpush1.bf16.msra.mxu0 0
      %1126 = vmatprep.subr.bf16.mxu0 0
      %1127 = vmatpush1.bf16.msra.mxu0 0
      %1128 = vmatprep.subr.bf16.mxu0 0
      %1129 = vmatpush1.bf16.msra.mxu0 0
      %1130 = vmatprep.subr.bf16.mxu0 0
      %1131 = vmatpush1.bf16.msra.mxu0 %v1114
      %1132 = vmatprep.subr.bf16.mxu0 0
      %1133 = vmatpush2.bf16.msra.mxu0 0
      %1134 = vmatprep.subr.bf16.mxu0 0
      %1135 = vmatpush2.bf16.msra.mxu0 0
      %1136 = vmatprep.subr.bf16.mxu0 0
      %1137 = vmatpush2.bf16.msra.mxu0 0
      %1138 = vmatprep.subr.bf16.mxu0 0
      %1139 = vmatpush2.bf16.msra.mxu0 0
      %1140 = vmatprep.subr.bf16.mxu0 0
      %1141 = vmatpush2.bf16.msra.mxu0 0
      %1142 = vmatprep.subr.bf16.mxu0 0
      %1143 = vmatpush2.bf16.msra.mxu0 0
      %1144 = vmatprep.subr.bf16.mxu0 0
      %1145 = vmatpush2.bf16.msra.mxu0 0
      %1146 = vmatprep.subr.bf16.mxu0 0
      %1147 = vmatpush2.bf16.msra.mxu0 0
      %1148 = vmatprep.mubr.bf16.mxu0 0
      %1149 = vmatmul.mubr.bf16.gmra.mxu0 %v1099
      %v1150 = vpop.f32.mrf.mxu0
      %v1151 = vadd.f32 0.0, %v1150
      %v1152 = vpop.f32.mrf.mxu0
      %v1153 = vpop.f32.mrf.mxu0
      %v1154 = vadd.f32 0.0, %v1153
      %v1155 = vpop.f32.mrf.mxu0
      %1156 = vmatprep.mubr.bf16.mxu0 0
      %1157 = vmatmul.mubr.bf16.gmra.mxu0 %v1102
      %v1158 = vpop.f32.mrf.mxu0
      %v1159 = vadd.f32 0.0, %v1158
      %v1160 = vpop.f32.mrf.mxu0
      %v1161 = vpop.f32.mrf.mxu0
      %v1162 = vadd.f32 0.0, %v1161
      %v1163 = vpop.f32.mrf.mxu0
      %1164 = vmatprep.mubr.bf16.mxu0 0
      %1165 = vmatmul.mubr.bf16.gmra.mxu0 %v1105
      %v1166 = vpop.f32.mrf.mxu0
      %v1167 = vadd.f32 0.0, %v1166
      %v1168 = vpop.f32.mrf.mxu0
      %v1169 = vpop.f32.mrf.mxu0
      %v1170 = vadd.f32 0.0, %v1169
      %v1171 = vpop.f32.mrf.mxu0
      %1172 = vmatprep.mubr.bf16.mxu0 0
      %1173 = vmatmul.mubr.bf16.gmra.mxu0 %v1108
      %v1174 = vpop.f32.mrf.mxu0
      %v1175 = vadd.f32 0.0, %v1174
      %v1176 = vpop.f32.mrf.mxu0
      %v1177 = vpop.f32.mrf.mxu0
      %v1178 = vadd.f32 0.0, %v1177
      %v1179 = vpop.f32.mrf.mxu0
      %1180 = vmatprep.mubr.bf16.mxu0 0
      %1181 = vmatmul.mubr.bf16.gmra.mxu0 %v1111
      %v1182 = vpop.f32.mrf.mxu0
      %v1183 = vadd.f32 0.0, %v1182
      %v1184 = vpop.f32.mrf.mxu0
      %v1185 = vpop.f32.mrf.mxu0
      %v1186 = vadd.f32 0.0, %v1185
      %v1187 = vpop.f32.mrf.mxu0
      %1188 = vdwg.mxu0
      %v1189 = vadd.f32 %v1069, %v1151
      %v1190 = vadd.f32 %v1070, %v1154
      %v1191 = vadd.f32 %v1071, %v1159
      %v1192 = vadd.f32 %v1072, %v1162
      %v1193 = vadd.f32 %v1073, %v1167
      %v1194 = vadd.f32 %v1074, %v1170
      %v1195 = vadd.f32 %v1075, %v1175
      %v1196 = vadd.f32 %v1076, %v1178
      %v1197 = vadd.f32 %v1077, %v1183
      %v1198 = vadd.f32 %v1078, %v1186
      %s1199 = sadd.s32 %s258, 22
      %s1200 = scalar_lea.vmem %s236, %s1199
      %v1201 = vld [vmem:[%s1200] sm:$0xff]
      %v1202 = vld [vmem:[%s1200 + $0x8] sm:$0xff]
      %v1203 = vld [vmem:[%s1200 + $0x10] sm:$0xff]
      %v1204 = vld [vmem:[%s1200 + $0x18] sm:$0xff]
      %v1205 = vld [vmem:[%s1200 + $0x20] sm:$0xff]
      %v1206 = vld [vmem:[%s1200 + $0x28] sm:$0xff]
      %v1207 = vld [vmem:[%s1200 + $0x30] sm:$0xff]
      %v1208 = vld [vmem:[%s1200 + $0x38] sm:$0xff]
      %v1209 = vld [vmem:[%s1200 + $0x40] sm:$0xff]
      %v1210 = vld [vmem:[%s1200 + $0x48] sm:$0xff]
      %v1211 = vpack.c.bf16 %v1202, %v1201
      %v1212 = vpack.c.bf16 %v1204, %v1203
      %v1213 = vpack.c.bf16 %v1206, %v1205
      %v1214 = vpack.c.bf16 %v1208, %v1207
      %v1215 = vpack.c.bf16 %v1210, %v1209
      %s1216 = scalar_lea.vmem %s1, 32
      %v1217 = vld [vmem:[%s1216] sm:$0xf]
      %v1219 = vsel %vm295, %v1211, 0
      %v1222 = vsel %vm295, %v1212, 0
      %v1225 = vsel %vm295, %v1213, 0
      %v1228 = vsel %vm295, %v1214, 0
      %v1231 = vsel %vm295, %v1215, 0
      %v1234 = vsel %vm311, %v1217, 0
      %1236 = vmatprep.subr.bf16.mxu0 0
      %1237 = vmatpush1.bf16.msra.mxu0 0
      %1238 = vmatprep.subr.bf16.mxu0 0
      %1239 = vmatpush1.bf16.msra.mxu0 0
      %1240 = vmatprep.subr.bf16.mxu0 0
      %1241 = vmatpush1.bf16.msra.mxu0 0
      %1242 = vmatprep.subr.bf16.mxu0 0
      %1243 = vmatpush1.bf16.msra.mxu0 0
      %1244 = vmatprep.subr.bf16.mxu0 0
      %1245 = vmatpush1.bf16.msra.mxu0 0
      %1246 = vmatprep.subr.bf16.mxu0 0
      %1247 = vmatpush1.bf16.msra.mxu0 0
      %1248 = vmatprep.subr.bf16.mxu0 0
      %1249 = vmatpush1.bf16.msra.mxu0 0
      %1250 = vmatprep.subr.bf16.mxu0 0
      %1251 = vmatpush1.bf16.msra.mxu0 %v1234
      %1252 = vmatprep.subr.bf16.mxu0 0
      %1253 = vmatpush2.bf16.msra.mxu0 0
      %1254 = vmatprep.subr.bf16.mxu0 0
      %1255 = vmatpush2.bf16.msra.mxu0 0
      %1256 = vmatprep.subr.bf16.mxu0 0
      %1257 = vmatpush2.bf16.msra.mxu0 0
      %1258 = vmatprep.subr.bf16.mxu0 0
      %1259 = vmatpush2.bf16.msra.mxu0 0
      %1260 = vmatprep.subr.bf16.mxu0 0
      %1261 = vmatpush2.bf16.msra.mxu0 0
      %1262 = vmatprep.subr.bf16.mxu0 0
      %1263 = vmatpush2.bf16.msra.mxu0 0
      %1264 = vmatprep.subr.bf16.mxu0 0
      %1265 = vmatpush2.bf16.msra.mxu0 0
      %1266 = vmatprep.subr.bf16.mxu0 0
      %1267 = vmatpush2.bf16.msra.mxu0 0
      %1268 = vmatprep.mubr.bf16.mxu0 0
      %1269 = vmatmul.mubr.bf16.gmra.mxu0 %v1219
      %v1270 = vpop.f32.mrf.mxu0
      %v1271 = vadd.f32 0.0, %v1270
      %v1272 = vpop.f32.mrf.mxu0
      %v1273 = vpop.f32.mrf.mxu0
      %v1274 = vadd.f32 0.0, %v1273
      %v1275 = vpop.f32.mrf.mxu0
      %1276 = vmatprep.mubr.bf16.mxu0 0
      %1277 = vmatmul.mubr.bf16.gmra.mxu0 %v1222
      %v1278 = vpop.f32.mrf.mxu0
      %v1279 = vadd.f32 0.0, %v1278
      %v1280 = vpop.f32.mrf.mxu0
      %v1281 = vpop.f32.mrf.mxu0
      %v1282 = vadd.f32 0.0, %v1281
      %v1283 = vpop.f32.mrf.mxu0
      %1284 = vmatprep.mubr.bf16.mxu0 0
      %1285 = vmatmul.mubr.bf16.gmra.mxu0 %v1225
      %v1286 = vpop.f32.mrf.mxu0
      %v1287 = vadd.f32 0.0, %v1286
      %v1288 = vpop.f32.mrf.mxu0
      %v1289 = vpop.f32.mrf.mxu0
      %v1290 = vadd.f32 0.0, %v1289
      %v1291 = vpop.f32.mrf.mxu0
      %1292 = vmatprep.mubr.bf16.mxu0 0
      %1293 = vmatmul.mubr.bf16.gmra.mxu0 %v1228
      %v1294 = vpop.f32.mrf.mxu0
      %v1295 = vadd.f32 0.0, %v1294
      %v1296 = vpop.f32.mrf.mxu0
      %v1297 = vpop.f32.mrf.mxu0
      %v1298 = vadd.f32 0.0, %v1297
      %v1299 = vpop.f32.mrf.mxu0
      %1300 = vmatprep.mubr.bf16.mxu0 0
      %1301 = vmatmul.mubr.bf16.gmra.mxu0 %v1231
      %v1302 = vpop.f32.mrf.mxu0
      %v1303 = vadd.f32 0.0, %v1302
      %v1304 = vpop.f32.mrf.mxu0
      %v1305 = vpop.f32.mrf.mxu0
      %v1306 = vadd.f32 0.0, %v1305
      %v1307 = vpop.f32.mrf.mxu0
      %1308 = vdwg.mxu0
      %v1309 = vadd.f32 %v1189, %v1271
      %v1310 = vadd.f32 %v1190, %v1274
      %v1311 = vadd.f32 %v1191, %v1279
      %v1312 = vadd.f32 %v1192, %v1282
      %v1313 = vadd.f32 %v1193, %v1287
      %v1314 = vadd.f32 %v1194, %v1290
      %v1315 = vadd.f32 %v1195, %v1295
      %v1316 = vadd.f32 %v1196, %v1298
      %v1317 = vadd.f32 %v1197, %v1303
      %v1318 = vadd.f32 %v1198, %v1306
      %v1319 = vld [vmem:[%s2] sm:$0x1]
      %v1321 = vlaneseq
      %v1322 = vshrl.u32 %v1321, 7
      %v1323 = vsub.s32 0, %v1322
      %v1324 = vrot.slane %v1319, %v1323
      %v1326 = vadd.f32 %v1309, %v1324
      %v1327 = vadd.f32 %v1310, %v1324
      %v1328 = vadd.f32 %v1311, %v1324
      %v1329 = vadd.f32 %v1312, %v1324
      %v1330 = vadd.f32 %v1313, %v1324
      %v1331 = vadd.f32 %v1314, %v1324
      %v1332 = vadd.f32 %v1315, %v1324
      %v1333 = vadd.f32 %v1316, %v1324
      %v1334 = vadd.f32 %v1317, %v1324
      %v1335 = vadd.f32 %v1318, %v1324
      %v1336 = vmax.f32 %v1326, 0.0
      %v1337 = vmax.f32 %v1327, 0.0
      %v1338 = vmax.f32 %v1328, 0.0
      %v1339 = vmax.f32 %v1329, 0.0
      %v1340 = vmax.f32 %v1330, 0.0
      %v1341 = vmax.f32 %v1331, 0.0
      %v1342 = vmax.f32 %v1332, 0.0
      %v1343 = vmax.f32 %v1333, 0.0
      %v1344 = vmax.f32 %v1334, 0.0
      %v1345 = vmax.f32 %v1335, 0.0
      %v1346 = vld [vmem:[%s245] sm:$0xff]
      %v1347 = vld [vmem:[%s245 + $0x8] sm:$0xff]
      %v1348 = vld [vmem:[%s245 + $0x10] sm:$0xff]
      %v1349 = vld [vmem:[%s245 + $0x18] sm:$0xff]
      %v1350 = vld [vmem:[%s245 + $0x20] sm:$0xff]
      %v1351 = vld [vmem:[%s245 + $0x28] sm:$0xff]
      %v1352 = vld [vmem:[%s245 + $0x30] sm:$0xff]
      %v1353 = vld [vmem:[%s245 + $0x38] sm:$0xff]
      %v1354 = vld [vmem:[%s245 + $0x40] sm:$0xff]
      %v1355 = vld [vmem:[%s245 + $0x48] sm:$0xff]
      %v1356 = vadd.f32 %v1336, %v1346
      %v1357 = vadd.f32 %v1337, %v1347
      %v1358 = vadd.f32 %v1338, %v1348
      %v1359 = vadd.f32 %v1339, %v1349
      %v1360 = vadd.f32 %v1340, %v1350
      %v1361 = vadd.f32 %v1341, %v1351
      %v1362 = vadd.f32 %v1342, %v1352
      %v1363 = vadd.f32 %v1343, %v1353
      %v1364 = vadd.f32 %v1344, %v1354
      %v1365 = vadd.f32 %v1345, %v1355
      %vm1366 = vcmask 130048
      %1367 = vst.msk [vmem:[%s255] sm:$0xff] %vm1366, %v1356
      %1368 = vst.msk [vmem:[%s255 + $0x8] sm:$0xff] %vm1366, %v1357
      %1369 = vst.msk [vmem:[%s255 + $0x10] sm:$0xff] %vm1366, %v1358
      %1370 = vst.msk [vmem:[%s255 + $0x18] sm:$0xff] %vm1366, %v1359
      %1371 = vst.msk [vmem:[%s255 + $0x20] sm:$0xff] %vm1366, %v1360
      %1372 = vst.msk [vmem:[%s255 + $0x28] sm:$0xff] %vm1366, %v1361
      %1373 = vst.msk [vmem:[%s255 + $0x30] sm:$0xff] %vm1366, %v1362
      %1374 = vst.msk [vmem:[%s255 + $0x38] sm:$0xff] %vm1366, %v1363
      %1375 = vst.msk [vmem:[%s255 + $0x40] sm:$0xff] %vm1366, %v1364
      %1376 = vst.msk [vmem:[%s255 + $0x48] sm:$0xff] %vm1366, %v1365
      %s1377 = smul.u32 10, %s20
      %p1378 = scmp.lt.s32.totalorder %s19, 1
      %s1379 = scalar_select %p1378, %s19, 1
      %p1380 = scmp.lt.s32.totalorder %s1377, 9
      %s1381 = scalar_select %p1380, %s1377, 9
      %s1382 = smul.addr %s1379, 10
      %s1383 = sadd.s32 %s1381, %s1382
      %s1384 = smul.addr %s1383, 8
      %s1385 = scalar_lea.vmem %s4, %s1384
      // Predicated region
      $region37: #{_lambda_.3} parent=35 // pred_check
        %p1386 = pneg %p143
      $region38: #{_lambda_.3} parent=35 // pred_check_branch
        %1388 = sbr.rel (%p1386) target = $region40
      $region39: #{_lambda_.3} parent=35 // pred_region
        %s1389 = smul.u32 10, %s20
      $region40: #{_lambda_.3} parent=35 // pred_fallthru
        _
    $region36: #{_lambda_.3} parent=5 // pred_fallthru
      _
    %p1390 = scmp.le.s32.totalorder 2, %s10
    // Predicated region
    $region41: #{_lambda_.3} parent=5 // pred_check
      %p1391 = pneg %p1390
    $region42: #{_lambda_.3} parent=5 // pred_check_branch
      %1393 = sbr.rel (%p1391) target = $region44
    $region43: #{_lambda_.3} parent=5 // pred_region
      %s1394 = ssub.s32 %s10, 2
      // Predicated region
      $region45: #{_lambda_.3} parent=43 // pred_check
        %p1395 = pneg %p149
      $region46: #{_lambda_.3} parent=43 // pred_check_branch
        %1397 = sbr.rel (%p1395) target = $region48
      $region47: #{_lambda_.3} parent=43 // pred_region
        %s1398 = smul.u32 10, %s22
        %p1399 = scmp.lt.s32.totalorder %s21, 1
        %s1400 = scalar_select %p1399, %s21, 1
        %p1401 = scmp.lt.s32.totalorder %s1398, 9
        %s1402 = scalar_select %p1401, %s1398, 9
        %s1403 = smul.addr %s1400, 10
        %s1404 = sadd.s32 %s1402, %s1403
        %s1405 = smul.addr %s1404, 8
        %s1406 = scalar_lea.vmem %s4, %s1405
      $region48: #{_lambda_.3} parent=43 // pred_fallthru
        _
    $region44: #{_lambda_.3} parent=5 // pred_fallthru
      _
  $region6: #{_lambda_.3} parent=0 // loop_footer
    %s14 = sadd.s32 1, %s10
  $region7: #{_lambda_.3} parent=0 // loop_footer_branch
    %9 = sbr.rel target = $region3
  $region8: #{_lambda_.3} parent=0 // loop_exit
    _

</llo_original>
